<compile_context>
chip_gen: v5e
topology: v5e:2x2
jax: 0.10.0
libtpu: 0.0.40
codegen_flags: <defaults>
</compile_context>

<pallas_src>
import jax
import jax.numpy as jnp
import numpy as np
from jax.experimental import pallas as pl
from jax.experimental.pallas import tpu as pltpu

CHAR_DIM = 128          # embedding dim (char_dim)
CONV = 32               # base conv channels
KERNELS = (4, 8, 12)    # protein_kernel
FC1_OUT = 256
LEAKY_SLOPE = 0.01      # nn.LeakyReLU default negative_slope
VOCAB = 26
VOCAB_PAD = 32          # vocab padded to 32; rows 26..31 are zero / never hit
C3 = CONV * 3           # 96 real conv3 channels
C3_PAD = 128            # conv3 channels padded 96 -> 128 (zero weights/bias)
MAX_BT = 8              # batch elements processed per grid step


def sequence_protein_kernel(
    tok_ref,            # (1, L, Bt) int32   tokens, sequence length on sublanes
    e1_ref, b1_ref,     # (4*32, 32) bf16, (1, 32) f32   (embed folded into conv1)
    w2_ref, b2_ref,     # (8*32, 64) bf16, (1, 64) f32
    w3_ref, b3_ref,     # (12*64, 128) bf16, (1, 128) f32  (out ch padded 96->128)
    wfc_ref, bfc_ref,   # (128, 256) f32 (rows 96..127 zero), (1, 256) f32
    o_ref,              # (Bt, 256) f32
):
    l = tok_ref.shape[1]
    bt = tok_ref.shape[2]
    k1, k2, k3 = KERNELS
    l1 = l - k1 + 1
    l2 = l1 - k2 + 1
    l3 = l2 - k3 + 1

    tok_all = tok_ref[0]          # (L, Bt) int32
    e1 = e1_ref[...]
    w2 = w2_ref[...]
    w3 = w3_ref[...]
    b1 = b1_ref[...]
    b2 = b2_ref[...]
    b3 = b3_ref[...]

    vocab_iota = jax.lax.broadcasted_iota(jnp.int32, (l, VOCAB_PAD), 1)

    pooled_rows = []
    for i in range(bt):           # static unroll over the small batch block
        tcol = tok_all[:, i:i + 1]                                   # (L, 1)
        oh = jnp.where(tcol == vocab_iota, 1.0, 0.0).astype(jnp.bfloat16)

        # conv1 (embedding folded in): im2col over the one-hot, single matmul
        win1 = jnp.concatenate([oh[k:k + l1, :] for k in range(k1)], axis=1)
        h1 = jnp.dot(win1, e1, preferred_element_type=jnp.float32) + b1
        h1 = jnp.maximum(h1, 0.0).astype(jnp.bfloat16)               # (L1, 32)

        # conv2: contraction depth 8*32 = 256
        win2 = jnp.concatenate([h1[k:k + l2, :] for k in range(k2)], axis=1)
        h2 = jnp.dot(win2, w2, preferred_element_type=jnp.float32) + b2
        h2 = jnp.maximum(h2, 0.0).astype(jnp.bfloat16)               # (L2, 64)

        # conv3: contraction depth 12*64 = 768, lane-dense (padded) output
        win3 = jnp.concatenate([h2[k:k + l3, :] for k in range(k3)], axis=1)
        h3 = jnp.dot(win3, w3, preferred_element_type=jnp.float32) + b3
        h3 = jnp.maximum(h3, 0.0)                                    # (L3, 128)

        # Global max pool over conv length (MaxPool1d + squeeze)
        pooled_rows.append(jnp.max(h3, axis=0, keepdims=True))       # (1, 128)

    pooled = jnp.concatenate(pooled_rows, axis=0)                    # (Bt, 128)

    # fc1 + LeakyReLU; padded wfc rows are zero so padded channels are inert
    y = jnp.dot(pooled, wfc_ref[...], preferred_element_type=jnp.float32)
    y = y + bfc_ref[...]
    o_ref[...] = jnp.where(y > 0, y, LEAKY_SLOPE * y)


@jax.jit
def sequence_protein_forward(tokens, params):
    """tokens: (B, L) int32 in [0, 26)."""
    b, l = tokens.shape
    k1, k2, k3 = KERNELS

    bt = min(MAX_BT, b)
    b_pad = ((b + bt - 1) // bt) * bt
    nb = b_pad // bt

    # ---------------- host-side weight staging (tiny) ----------------------
    embed_pad = jnp.zeros((VOCAB_PAD, CHAR_DIM), jnp.float32)
    embed_pad = embed_pad.at[:VOCAB].set(params["embed"].astype(jnp.float32))
    # Fold embedding into conv1: E1[k, v, o] = sum_c embed[v, c] * w1[k, c, o]
    e1 = jnp.einsum("vc,kco->kvo", embed_pad, params["w1"].astype(jnp.float32))
    e1f = e1.reshape(k1 * VOCAB_PAD, CONV).astype(jnp.bfloat16)        # (128, 32)

    w2f = params["w2"].reshape(k2 * CONV, 2 * CONV).astype(jnp.bfloat16)  # (256, 64)

    w3f = jnp.zeros((k3 * 2 * CONV, C3_PAD), jnp.float32)
    w3f = w3f.at[:, :C3].set(params["w3"].reshape(k3 * 2 * CONV, C3))
    w3f = w3f.astype(jnp.bfloat16)                                     # (768, 128)
    b3p = jnp.zeros((1, C3_PAD), jnp.float32).at[:, :C3].set(params["b3"])

    wfcp = jnp.zeros((C3_PAD, FC1_OUT), jnp.float32).at[:C3].set(params["wfc"])
    b1 = params["b1"].astype(jnp.float32)
    b2 = params["b2"].astype(jnp.float32)
    bfc = params["bfc"].astype(jnp.float32)

    # tokens (B, L) -> (nb, L, Bt): length on sublanes, batch block on lanes
    if b_pad != b:
        tokens = jnp.concatenate(
            [tokens, jnp.zeros((b_pad - b, l), tokens.dtype)], axis=0)
    tokens_t = tokens.reshape(nb, bt, l).transpose(0, 2, 1)            # (nb, L, Bt)

    full = lambda *shape: pl.BlockSpec(shape, lambda bb: (0,) * len(shape))

    grid_spec = pltpu.PrefetchScalarGridSpec(
        num_scalar_prefetch=0,
        grid=(nb,),
        in_specs=[
            pl.BlockSpec((1, l, bt), lambda bb: (bb, 0, 0)),
            full(k1 * VOCAB_PAD, CONV), full(1, CONV),
            full(k2 * CONV, 2 * CONV), full(1, 2 * CONV),
            full(k3 * 2 * CONV, C3_PAD), full(1, C3_PAD),
            full(C3_PAD, FC1_OUT), full(1, FC1_OUT),
        ],
        out_specs=pl.BlockSpec((bt, FC1_OUT), lambda bb: (bb, 0)),
    )

    out = pl.pallas_call(
        sequence_protein_kernel,
        out_shape=jax.ShapeDtypeStruct((b_pad, FC1_OUT), jnp.float32),
        grid_spec=grid_spec,
        compiler_params=pltpu.CompilerParams(
            dimension_semantics=("parallel",),
            vmem_limit_bytes=48 * 1024 * 1024,
        ),
    )(tokens_t, e1f, b1, w2f, b2, w3f, b3p, wfcp, bfc)

    return out[:b]


def init_params(key):
    """Deterministic synthetic parameters matching the module's shapes."""
    ks = jax.random.split(key, 9)

    def unif(k, shape, fan_in):
        bound = 1.0 / float(np.sqrt(fan_in))
        return jax.random.uniform(k, shape, jnp.float32, -bound, bound)

    embed = jax.random.normal(ks[0], (VOCAB, CHAR_DIM), jnp.float32)
    embed = embed.at[0].set(0.0)  # padding_idx=0

    k1, k2, k3 = KERNELS
    return {
        "embed": embed,
        "w1": unif(ks[1], (k1, CHAR_DIM, CONV), CHAR_DIM * k1),
        "b1": unif(ks[2], (1, CONV), CHAR_DIM * k1),
        "w2": unif(ks[3], (k2, CONV, CONV * 2), CONV * k2),
        "b2": unif(ks[4], (1, CONV * 2), CONV * k2),
        "w3": unif(ks[5], (k3, CONV * 2, CONV * 3), CONV * 2 * k3),
        "b3": unif(ks[6], (1, CONV * 3), CONV * 2 * k3),
        "wfc": unif(ks[7], (CONV * 3, FC1_OUT), CONV * 3),
        "bfc": unif(ks[8], (1, FC1_OUT), CONV * 3),
    }


def reference_forward(tokens, params):
    """Pure-JAX f32 reference (embedding gather + per-tap conv)."""
    x = jnp.take(params["embed"], tokens, axis=0).astype(jnp.float32)  # (B,L,D)

    def conv(xb, w, bias):
        k = w.shape[0]
        l_out = xb.shape[1] - k + 1
        acc = jnp.broadcast_to(bias, (xb.shape[0], l_out, w.shape[2]))
        for kk in range(k):
            acc = acc + jnp.einsum("blc,cd->bld", xb[:, kk:kk + l_out, :], w[kk])
        return jnp.maximum(acc, 0.0)

    h = conv(x, params["w1"], params["b1"])
    h = conv(h, params["w2"], params["b2"])
    h = conv(h, params["w3"], params["b3"])
    pooled = jnp.max(h, axis=1)                       # (B, 96)
    y = pooled @ params["wfc"] + params["bfc"]        # (B, 256)
    return jnp.where(y > 0, y, LEAKY_SLOPE * y)


if __name__ == "__main__":
    # Small shapes consistent with the module: batch=2, seq len 64
    # (original uses L=1200 -> conv length 1179 -> MaxPool1d(1179) == global
    #  max; here conv length is 64-21=43 and the pool is still the global max).
    key = jax.random.PRNGKey(0)
    pkey, tkey = jax.random.split(key)

    params = init_params(pkey)
    B, L = 2, 64
    tokens = jax.random.randint(tkey, (B, L), 0, 26, dtype=jnp.int32)

    out = sequence_protein_forward(tokens, params)
    out = jax.block_until_ready(out)

    ref = reference_forward(tokens, params)
    assert out.shape == (B, FC1_OUT)
    # bf16 matmul operands with f32 accumulation: errors stay ~1e-3 here.
    np.testing.assert_allclose(np.asarray(out), np.asarray(ref),
                               rtol=2e-2, atol=2e-2)
    print("KERNEL_OK")
</pallas_src>

<mosaic_0001>
module attributes {stable_mosaic.version = 11 : i64} {
  func.func @sequence_protein_kernel(%arg0: i32, %arg1: memref<1x64x2xi32, #tpu.memory_space<vmem>>, %arg2: memref<128x32xbf16, #tpu.memory_space<vmem>>, %arg3: memref<1x32xf32, #tpu.memory_space<vmem>>, %arg4: memref<256x64xbf16, #tpu.memory_space<vmem>>, %arg5: memref<1x64xf32, #tpu.memory_space<vmem>>, %arg6: memref<768x128xbf16, #tpu.memory_space<vmem>>, %arg7: memref<1x128xf32, #tpu.memory_space<vmem>>, %arg8: memref<128x256xf32, #tpu.memory_space<vmem>>, %arg9: memref<1x256xf32, #tpu.memory_space<vmem>>, %arg10: memref<2x256xf32, #tpu.memory_space<vmem>>) attributes {dimension_semantics = [#tpu.dimension_semantics<parallel>], iteration_bounds = array<i64: 1>, scalar_prefetch = 0 : i64, scratch_operands = 0 : i64, tpu.core_type = #tpu.core_type<tc>, window_params = [{transform_indices = @transform_0, window_bounds = array<i64: 1, 64, 2>}, {pipeline_mode = #tpu.pipeline_mode<synchronous>, transform_indices = @transform_1, window_bounds = array<i64: 128, 32>}, {pipeline_mode = #tpu.pipeline_mode<synchronous>, transform_indices = @transform_2, window_bounds = array<i64: 1, 32>}, {pipeline_mode = #tpu.pipeline_mode<synchronous>, transform_indices = @transform_3, window_bounds = array<i64: 256, 64>}, {pipeline_mode = #tpu.pipeline_mode<synchronous>, transform_indices = @transform_4, window_bounds = array<i64: 1, 64>}, {pipeline_mode = #tpu.pipeline_mode<synchronous>, transform_indices = @transform_5, window_bounds = array<i64: 768, 128>}, {pipeline_mode = #tpu.pipeline_mode<synchronous>, transform_indices = @transform_6, window_bounds = array<i64: 1, 128>}, {pipeline_mode = #tpu.pipeline_mode<synchronous>, transform_indices = @transform_7, window_bounds = array<i64: 128, 256>}, {pipeline_mode = #tpu.pipeline_mode<synchronous>, transform_indices = @transform_8, window_bounds = array<i64: 1, 256>}, {transform_indices = @transform_9, window_bounds = array<i64: 2, 256>}]} {
    %c0 = arith.constant 0 : index
    %c0_0 = arith.constant 0 : index
    %c0_1 = arith.constant 0 : index
    %0 = vector.load %arg1[%c0, %c0_0, %c0_1] : memref<1x64x2xi32, #tpu.memory_space<vmem>>, vector<1x64x2xi32>
    %1 = vector.shape_cast %0 : vector<1x64x2xi32> to vector<64x2xi32>
    %c0_2 = arith.constant 0 : index
    %c0_3 = arith.constant 0 : index
    %2 = vector.load %arg2[%c0_2, %c0_3] : memref<128x32xbf16, #tpu.memory_space<vmem>>, vector<128x32xbf16>
    %c0_4 = arith.constant 0 : index
    %c0_5 = arith.constant 0 : index
    %3 = vector.load %arg4[%c0_4, %c0_5] : memref<256x64xbf16, #tpu.memory_space<vmem>>, vector<256x64xbf16>
    %c0_6 = arith.constant 0 : index
    %c0_7 = arith.constant 0 : index
    %4 = vector.load %arg6[%c0_6, %c0_7] : memref<768x128xbf16, #tpu.memory_space<vmem>>, vector<768x128xbf16>
    %c0_8 = arith.constant 0 : index
    %c0_9 = arith.constant 0 : index
    %5 = vector.load %arg3[%c0_8, %c0_9] : memref<1x32xf32, #tpu.memory_space<vmem>>, vector<1x32xf32>
    %c0_10 = arith.constant 0 : index
    %c0_11 = arith.constant 0 : index
    %6 = vector.load %arg5[%c0_10, %c0_11] : memref<1x64xf32, #tpu.memory_space<vmem>>, vector<1x64xf32>
    %c0_12 = arith.constant 0 : index
    %c0_13 = arith.constant 0 : index
    %7 = vector.load %arg7[%c0_12, %c0_13] : memref<1x128xf32, #tpu.memory_space<vmem>>, vector<1x128xf32>
    %8 = tpu.iota {dimensions = array<i32: 1>} : vector<64x32xi32>
    %9 = vector.extract_strided_slice %1 {offsets = [0, 0], sizes = [64, 1], strides = [1, 1]} : vector<64x2xi32> to vector<64x1xi32>
    %10 = vector.broadcast %9 : vector<64x1xi32> to vector<64x32xi32>
    %11 = arith.cmpi eq, %10, %8 : vector<64x32xi32>
    %cst = arith.constant 1.000000e+00 : f32
    %cst_14 = arith.constant 0.000000e+00 : f32
    %12 = vector.broadcast %cst : f32 to vector<64x32xf32>
    %13 = vector.broadcast %cst_14 : f32 to vector<64x32xf32>
    %14 = arith.select %11, %12, %13 : vector<64x32xi1>, vector<64x32xf32>
    %15 = arith.truncf %14 : vector<64x32xf32> to vector<64x32xbf16>
    %16 = vector.extract_strided_slice %15 {offsets = [0, 0], sizes = [61, 32], strides = [1, 1]} : vector<64x32xbf16> to vector<61x32xbf16>
    %17 = vector.extract_strided_slice %15 {offsets = [1, 0], sizes = [61, 32], strides = [1, 1]} : vector<64x32xbf16> to vector<61x32xbf16>
    %18 = vector.extract_strided_slice %15 {offsets = [2, 0], sizes = [61, 32], strides = [1, 1]} : vector<64x32xbf16> to vector<61x32xbf16>
    %19 = vector.extract_strided_slice %15 {offsets = [3, 0], sizes = [61, 32], strides = [1, 1]} : vector<64x32xbf16> to vector<61x32xbf16>
    %20 = tpu.concatenate %16, %17, %18, %19 in 1 : vector<61x32xbf16>, vector<61x32xbf16>, vector<61x32xbf16>, vector<61x32xbf16> -> vector<61x128xbf16>
    %cst_15 = arith.constant dense<0.000000e+00> : vector<61x32xf32>
    %21 = tpu.matmul %20, %2, %cst_15 {dimension_numbers = #tpu.dot_dimension_numbers<[1], [0], [0], [1], [0, 0, 1, 1], [], []>} : vector<61x128xbf16>, vector<128x32xbf16>, vector<61x32xf32> -> vector<61x32xf32>
    %22 = vector.broadcast %5 : vector<1x32xf32> to vector<61x32xf32>
    %23 = arith.addf %21, %22 : vector<61x32xf32>
    %cst_16 = arith.constant 0.000000e+00 : f32
    %24 = vector.broadcast %cst_16 : f32 to vector<61x32xf32>
    %25 = arith.maximumf %23, %24 : vector<61x32xf32>
    %26 = arith.truncf %25 : vector<61x32xf32> to vector<61x32xbf16>
    %27 = vector.extract_strided_slice %26 {offsets = [0, 0], sizes = [54, 32], strides = [1, 1]} : vector<61x32xbf16> to vector<54x32xbf16>
    %28 = vector.extract_strided_slice %26 {offsets = [1, 0], sizes = [54, 32], strides = [1, 1]} : vector<61x32xbf16> to vector<54x32xbf16>
    %29 = vector.extract_strided_slice %26 {offsets = [2, 0], sizes = [54, 32], strides = [1, 1]} : vector<61x32xbf16> to vector<54x32xbf16>
    %30 = vector.extract_strided_slice %26 {offsets = [3, 0], sizes = [54, 32], strides = [1, 1]} : vector<61x32xbf16> to vector<54x32xbf16>
    %31 = vector.extract_strided_slice %26 {offsets = [4, 0], sizes = [54, 32], strides = [1, 1]} : vector<61x32xbf16> to vector<54x32xbf16>
    %32 = vector.extract_strided_slice %26 {offsets = [5, 0], sizes = [54, 32], strides = [1, 1]} : vector<61x32xbf16> to vector<54x32xbf16>
    %33 = vector.extract_strided_slice %26 {offsets = [6, 0], sizes = [54, 32], strides = [1, 1]} : vector<61x32xbf16> to vector<54x32xbf16>
    %34 = vector.extract_strided_slice %26 {offsets = [7, 0], sizes = [54, 32], strides = [1, 1]} : vector<61x32xbf16> to vector<54x32xbf16>
    %35 = tpu.concatenate %27, %28, %29, %30, %31, %32, %33, %34 in 1 : vector<54x32xbf16>, vector<54x32xbf16>, vector<54x32xbf16>, vector<54x32xbf16>, vector<54x32xbf16>, vector<54x32xbf16>, vector<54x32xbf16>, vector<54x32xbf16> -> vector<54x256xbf16>
    %cst_17 = arith.constant dense<0.000000e+00> : vector<54x64xf32>
    %36 = tpu.matmul %35, %3, %cst_17 {dimension_numbers = #tpu.dot_dimension_numbers<[1], [0], [0], [1], [0, 0, 1, 1], [], []>} : vector<54x256xbf16>, vector<256x64xbf16>, vector<54x64xf32> -> vector<54x64xf32>
    %37 = vector.broadcast %6 : vector<1x64xf32> to vector<54x64xf32>
    %38 = arith.addf %36, %37 : vector<54x64xf32>
    %cst_18 = arith.constant 0.000000e+00 : f32
    %39 = vector.broadcast %cst_18 : f32 to vector<54x64xf32>
    %40 = arith.maximumf %38, %39 : vector<54x64xf32>
    %41 = arith.truncf %40 : vector<54x64xf32> to vector<54x64xbf16>
    %42 = vector.extract_strided_slice %41 {offsets = [0, 0], sizes = [43, 64], strides = [1, 1]} : vector<54x64xbf16> to vector<43x64xbf16>
    %43 = vector.extract_strided_slice %41 {offsets = [1, 0], sizes = [43, 64], strides = [1, 1]} : vector<54x64xbf16> to vector<43x64xbf16>
    %44 = vector.extract_strided_slice %41 {offsets = [2, 0], sizes = [43, 64], strides = [1, 1]} : vector<54x64xbf16> to vector<43x64xbf16>
    %45 = vector.extract_strided_slice %41 {offsets = [3, 0], sizes = [43, 64], strides = [1, 1]} : vector<54x64xbf16> to vector<43x64xbf16>
    %46 = vector.extract_strided_slice %41 {offsets = [4, 0], sizes = [43, 64], strides = [1, 1]} : vector<54x64xbf16> to vector<43x64xbf16>
    %47 = vector.extract_strided_slice %41 {offsets = [5, 0], sizes = [43, 64], strides = [1, 1]} : vector<54x64xbf16> to vector<43x64xbf16>
    %48 = vector.extract_strided_slice %41 {offsets = [6, 0], sizes = [43, 64], strides = [1, 1]} : vector<54x64xbf16> to vector<43x64xbf16>
    %49 = vector.extract_strided_slice %41 {offsets = [7, 0], sizes = [43, 64], strides = [1, 1]} : vector<54x64xbf16> to vector<43x64xbf16>
    %50 = vector.extract_strided_slice %41 {offsets = [8, 0], sizes = [43, 64], strides = [1, 1]} : vector<54x64xbf16> to vector<43x64xbf16>
    %51 = vector.extract_strided_slice %41 {offsets = [9, 0], sizes = [43, 64], strides = [1, 1]} : vector<54x64xbf16> to vector<43x64xbf16>
    %52 = vector.extract_strided_slice %41 {offsets = [10, 0], sizes = [43, 64], strides = [1, 1]} : vector<54x64xbf16> to vector<43x64xbf16>
    %53 = vector.extract_strided_slice %41 {offsets = [11, 0], sizes = [43, 64], strides = [1, 1]} : vector<54x64xbf16> to vector<43x64xbf16>
    %54 = tpu.concatenate %42, %43, %44, %45, %46, %47, %48, %49, %50, %51, %52, %53 in 1 : vector<43x64xbf16>, vector<43x64xbf16>, vector<43x64xbf16>, vector<43x64xbf16>, vector<43x64xbf16>, vector<43x64xbf16>, vector<43x64xbf16>, vector<43x64xbf16>, vector<43x64xbf16>, vector<43x64xbf16>, vector<43x64xbf16>, vector<43x64xbf16> -> vector<43x768xbf16>
    %cst_19 = arith.constant dense<0.000000e+00> : vector<43x128xf32>
    %55 = tpu.matmul %54, %4, %cst_19 {dimension_numbers = #tpu.dot_dimension_numbers<[1], [0], [0], [1], [0, 0, 1, 1], [], []>} : vector<43x768xbf16>, vector<768x128xbf16>, vector<43x128xf32> -> vector<43x128xf32>
    %56 = vector.broadcast %7 : vector<1x128xf32> to vector<43x128xf32>
    %57 = arith.addf %55, %56 : vector<43x128xf32>
    %cst_20 = arith.constant 0.000000e+00 : f32
    %58 = vector.broadcast %cst_20 : f32 to vector<43x128xf32>
    %59 = arith.maximumf %57, %58 : vector<43x128xf32>
    %cst_21 = arith.constant dense<0xFF800000> : vector<128xf32>
    %60 = vector.multi_reduction <maximumf>, %59, %cst_21 [0] : vector<43x128xf32> to vector<128xf32>
    %61 = vector.shape_cast %60 : vector<128xf32> to vector<1x128xf32>
    %62 = vector.extract_strided_slice %1 {offsets = [0, 1], sizes = [64, 1], strides = [1, 1]} : vector<64x2xi32> to vector<64x1xi32>
    %63 = vector.broadcast %62 : vector<64x1xi32> to vector<64x32xi32>
    %64 = arith.cmpi eq, %63, %8 : vector<64x32xi32>
    %cst_22 = arith.constant 1.000000e+00 : f32
    %cst_23 = arith.constant 0.000000e+00 : f32
    %65 = vector.broadcast %cst_22 : f32 to vector<64x32xf32>
    %66 = vector.broadcast %cst_23 : f32 to vector<64x32xf32>
    %67 = arith.select %64, %65, %66 : vector<64x32xi1>, vector<64x32xf32>
    %68 = arith.truncf %67 : vector<64x32xf32> to vector<64x32xbf16>
    %69 = vector.extract_strided_slice %68 {offsets = [0, 0], sizes = [61, 32], strides = [1, 1]} : vector<64x32xbf16> to vector<61x32xbf16>
    %70 = vector.extract_strided_slice %68 {offsets = [1, 0], sizes = [61, 32], strides = [1, 1]} : vector<64x32xbf16> to vector<61x32xbf16>
    %71 = vector.extract_strided_slice %68 {offsets = [2, 0], sizes = [61, 32], strides = [1, 1]} : vector<64x32xbf16> to vector<61x32xbf16>
    %72 = vector.extract_strided_slice %68 {offsets = [3, 0], sizes = [61, 32], strides = [1, 1]} : vector<64x32xbf16> to vector<61x32xbf16>
    %73 = tpu.concatenate %69, %70, %71, %72 in 1 : vector<61x32xbf16>, vector<61x32xbf16>, vector<61x32xbf16>, vector<61x32xbf16> -> vector<61x128xbf16>
    %cst_24 = arith.constant dense<0.000000e+00> : vector<61x32xf32>
    %74 = tpu.matmul %73, %2, %cst_24 {dimension_numbers = #tpu.dot_dimension_numbers<[1], [0], [0], [1], [0, 0, 1, 1], [], []>} : vector<61x128xbf16>, vector<128x32xbf16>, vector<61x32xf32> -> vector<61x32xf32>
    %75 = vector.broadcast %5 : vector<1x32xf32> to vector<61x32xf32>
    %76 = arith.addf %74, %75 : vector<61x32xf32>
    %cst_25 = arith.constant 0.000000e+00 : f32
    %77 = vector.broadcast %cst_25 : f32 to vector<61x32xf32>
    %78 = arith.maximumf %76, %77 : vector<61x32xf32>
    %79 = arith.truncf %78 : vector<61x32xf32> to vector<61x32xbf16>
    %80 = vector.extract_strided_slice %79 {offsets = [0, 0], sizes = [54, 32], strides = [1, 1]} : vector<61x32xbf16> to vector<54x32xbf16>
    %81 = vector.extract_strided_slice %79 {offsets = [1, 0], sizes = [54, 32], strides = [1, 1]} : vector<61x32xbf16> to vector<54x32xbf16>
    %82 = vector.extract_strided_slice %79 {offsets = [2, 0], sizes = [54, 32], strides = [1, 1]} : vector<61x32xbf16> to vector<54x32xbf16>
    %83 = vector.extract_strided_slice %79 {offsets = [3, 0], sizes = [54, 32], strides = [1, 1]} : vector<61x32xbf16> to vector<54x32xbf16>
    %84 = vector.extract_strided_slice %79 {offsets = [4, 0], sizes = [54, 32], strides = [1, 1]} : vector<61x32xbf16> to vector<54x32xbf16>
    %85 = vector.extract_strided_slice %79 {offsets = [5, 0], sizes = [54, 32], strides = [1, 1]} : vector<61x32xbf16> to vector<54x32xbf16>
    %86 = vector.extract_strided_slice %79 {offsets = [6, 0], sizes = [54, 32], strides = [1, 1]} : vector<61x32xbf16> to vector<54x32xbf16>
    %87 = vector.extract_strided_slice %79 {offsets = [7, 0], sizes = [54, 32], strides = [1, 1]} : vector<61x32xbf16> to vector<54x32xbf16>
    %88 = tpu.concatenate %80, %81, %82, %83, %84, %85, %86, %87 in 1 : vector<54x32xbf16>, vector<54x32xbf16>, vector<54x32xbf16>, vector<54x32xbf16>, vector<54x32xbf16>, vector<54x32xbf16>, vector<54x32xbf16>, vector<54x32xbf16> -> vector<54x256xbf16>
    %cst_26 = arith.constant dense<0.000000e+00> : vector<54x64xf32>
    %89 = tpu.matmul %88, %3, %cst_26 {dimension_numbers = #tpu.dot_dimension_numbers<[1], [0], [0], [1], [0, 0, 1, 1], [], []>} : vector<54x256xbf16>, vector<256x64xbf16>, vector<54x64xf32> -> vector<54x64xf32>
    %90 = vector.broadcast %6 : vector<1x64xf32> to vector<54x64xf32>
    %91 = arith.addf %89, %90 : vector<54x64xf32>
    %cst_27 = arith.constant 0.000000e+00 : f32
    %92 = vector.broadcast %cst_27 : f32 to vector<54x64xf32>
    %93 = arith.maximumf %91, %92 : vector<54x64xf32>
    %94 = arith.truncf %93 : vector<54x64xf32> to vector<54x64xbf16>
    %95 = vector.extract_strided_slice %94 {offsets = [0, 0], sizes = [43, 64], strides = [1, 1]} : vector<54x64xbf16> to vector<43x64xbf16>
    %96 = vector.extract_strided_slice %94 {offsets = [1, 0], sizes = [43, 64], strides = [1, 1]} : vector<54x64xbf16> to vector<43x64xbf16>
    %97 = vector.extract_strided_slice %94 {offsets = [2, 0], sizes = [43, 64], strides = [1, 1]} : vector<54x64xbf16> to vector<43x64xbf16>
    %98 = vector.extract_strided_slice %94 {offsets = [3, 0], sizes = [43, 64], strides = [1, 1]} : vector<54x64xbf16> to vector<43x64xbf16>
    %99 = vector.extract_strided_slice %94 {offsets = [4, 0], sizes = [43, 64], strides = [1, 1]} : vector<54x64xbf16> to vector<43x64xbf16>
    %100 = vector.extract_strided_slice %94 {offsets = [5, 0], sizes = [43, 64], strides = [1, 1]} : vector<54x64xbf16> to vector<43x64xbf16>
    %101 = vector.extract_strided_slice %94 {offsets = [6, 0], sizes = [43, 64], strides = [1, 1]} : vector<54x64xbf16> to vector<43x64xbf16>
    %102 = vector.extract_strided_slice %94 {offsets = [7, 0], sizes = [43, 64], strides = [1, 1]} : vector<54x64xbf16> to vector<43x64xbf16>
    %103 = vector.extract_strided_slice %94 {offsets = [8, 0], sizes = [43, 64], strides = [1, 1]} : vector<54x64xbf16> to vector<43x64xbf16>
    %104 = vector.extract_strided_slice %94 {offsets = [9, 0], sizes = [43, 64], strides = [1, 1]} : vector<54x64xbf16> to vector<43x64xbf16>
    %105 = vector.extract_strided_slice %94 {offsets = [10, 0], sizes = [43, 64], strides = [1, 1]} : vector<54x64xbf16> to vector<43x64xbf16>
    %106 = vector.extract_strided_slice %94 {offsets = [11, 0], sizes = [43, 64], strides = [1, 1]} : vector<54x64xbf16> to vector<43x64xbf16>
    %107 = tpu.concatenate %95, %96, %97, %98, %99, %100, %101, %102, %103, %104, %105, %106 in 1 : vector<43x64xbf16>, vector<43x64xbf16>, vector<43x64xbf16>, vector<43x64xbf16>, vector<43x64xbf16>, vector<43x64xbf16>, vector<43x64xbf16>, vector<43x64xbf16>, vector<43x64xbf16>, vector<43x64xbf16>, vector<43x64xbf16>, vector<43x64xbf16> -> vector<43x768xbf16>
    %cst_28 = arith.constant dense<0.000000e+00> : vector<43x128xf32>
    %108 = tpu.matmul %107, %4, %cst_28 {dimension_numbers = #tpu.dot_dimension_numbers<[1], [0], [0], [1], [0, 0, 1, 1], [], []>} : vector<43x768xbf16>, vector<768x128xbf16>, vector<43x128xf32> -> vector<43x128xf32>
    %109 = vector.broadcast %7 : vector<1x128xf32> to vector<43x128xf32>
    %110 = arith.addf %108, %109 : vector<43x128xf32>
    %cst_29 = arith.constant 0.000000e+00 : f32
    %111 = vector.broadcast %cst_29 : f32 to vector<43x128xf32>
    %112 = arith.maximumf %110, %111 : vector<43x128xf32>
    %cst_30 = arith.constant dense<0xFF800000> : vector<128xf32>
    %113 = vector.multi_reduction <maximumf>, %112, %cst_30 [0] : vector<43x128xf32> to vector<128xf32>
    %114 = vector.shape_cast %113 : vector<128xf32> to vector<1x128xf32>
    %115 = tpu.concatenate %61, %114 in 0 : vector<1x128xf32>, vector<1x128xf32> -> vector<2x128xf32>
    %c0_31 = arith.constant 0 : index
    %c0_32 = arith.constant 0 : index
    %116 = vector.load %arg8[%c0_31, %c0_32] : memref<128x256xf32, #tpu.memory_space<vmem>>, vector<128x256xf32>
    %cst_33 = arith.constant dense<0.000000e+00> : vector<2x256xf32>
    %117 = tpu.matmul %115, %116, %cst_33 {dimension_numbers = #tpu.dot_dimension_numbers<[1], [0], [0], [1], [0, 0, 1, 1], [], []>} : vector<2x128xf32>, vector<128x256xf32>, vector<2x256xf32> -> vector<2x256xf32>
    %c0_34 = arith.constant 0 : index
    %c0_35 = arith.constant 0 : index
    %118 = vector.load %arg9[%c0_34, %c0_35] : memref<1x256xf32, #tpu.memory_space<vmem>>, vector<1x256xf32>
    %119 = vector.broadcast %118 : vector<1x256xf32> to vector<2x256xf32>
    %120 = arith.addf %117, %119 : vector<2x256xf32>
    %cst_36 = arith.constant 0.000000e+00 : f32
    %121 = vector.broadcast %cst_36 : f32 to vector<2x256xf32>
    %122 = arith.cmpf ogt, %120, %121 : vector<2x256xf32>
    %cst_37 = arith.constant 0.00999999977 : f32
    %123 = vector.broadcast %cst_37 : f32 to vector<2x256xf32>
    %124 = arith.mulf %123, %120 : vector<2x256xf32>
    %125 = arith.select %122, %120, %124 : vector<2x256xi1>, vector<2x256xf32>
    %c0_38 = arith.constant 0 : index
    %c0_39 = arith.constant 0 : index
    %126 = vector.load %arg10[%c0_38, %c0_39] : memref<2x256xf32, #tpu.memory_space<vmem>>, vector<2x256xf32>
    tpu.vector_store %arg10[%c0_38, %c0_39], %125 {strides = array<i32>} : memref<2x256xf32, #tpu.memory_space<vmem>>, vector<2x256xf32>,
    return
  }
  func.func @transform_0(%arg0: i32) -> (i32, i32, i32) {
    %c0_i32 = arith.constant 0 : i32
    %c0_i32_0 = arith.constant 0 : i32
    %c0_i32_1 = arith.constant 0 : i32
    return %arg0, %c0_i32, %c0_i32_0 : i32, i32, i32
  }
  func.func @transform_1(%arg0: i32) -> (i32, i32) {
    %c0_i32 = arith.constant 0 : i32
    %c0_i32_0 = arith.constant 0 : i32
    %c0_i32_1 = arith.constant 0 : i32
    return %c0_i32, %c0_i32_0 : i32, i32
  }
  func.func @transform_2(%arg0: i32) -> (i32, i32) {
    %c0_i32 = arith.constant 0 : i32
    %c0_i32_0 = arith.constant 0 : i32
    %c0_i32_1 = arith.constant 0 : i32
    return %c0_i32, %c0_i32_0 : i32, i32
  }
  func.func @transform_3(%arg0: i32) -> (i32, i32) {
    %c0_i32 = arith.constant 0 : i32
    %c0_i32_0 = arith.constant 0 : i32
    %c0_i32_1 = arith.constant 0 : i32
    return %c0_i32, %c0_i32_0 : i32, i32
  }
  func.func @transform_4(%arg0: i32) -> (i32, i32) {
    %c0_i32 = arith.constant 0 : i32
    %c0_i32_0 = arith.constant 0 : i32
    %c0_i32_1 = arith.constant 0 : i32
    return %c0_i32, %c0_i32_0 : i32, i32
  }
  func.func @transform_5(%arg0: i32) -> (i32, i32) {
    %c0_i32 = arith.constant 0 : i32
    %c0_i32_0 = arith.constant 0 : i32
    %c0_i32_1 = arith.constant 0 : i32
    return %c0_i32, %c0_i32_0 : i32, i32
  }
  func.func @transform_6(%arg0: i32) -> (i32, i32) {
    %c0_i32 = arith.constant 0 : i32
    %c0_i32_0 = arith.constant 0 : i32
    %c0_i32_1 = arith.constant 0 : i32
    return %c0_i32, %c0_i32_0 : i32, i32
  }
  func.func @transform_7(%arg0: i32) -> (i32, i32) {
    %c0_i32 = arith.constant 0 : i32
    %c0_i32_0 = arith.constant 0 : i32
    %c0_i32_1 = arith.constant 0 : i32
    return %c0_i32, %c0_i32_0 : i32, i32
  }
  func.func @transform_8(%arg0: i32) -> (i32, i32) {
    %c0_i32 = arith.constant 0 : i32
    %c0_i32_0 = arith.constant 0 : i32
    %c0_i32_1 = arith.constant 0 : i32
    return %c0_i32, %c0_i32_0 : i32, i32
  }
  func.func @transform_9(%arg0: i32) -> (i32, i32) {
    %c0_i32 = arith.constant 0 : i32
    %c0_i32_0 = arith.constant 0 : i32
    return %arg0, %c0_i32 : i32, i32
  }
}

</mosaic_0001>

<llo_original>
// kernel: sequence_protein_forward.1
$region0: #{sequence_protein_forward.1}
  #allocation0 [shape = 'u32[]', space=smem, size = 0x4, offset = 0x4, fixed_abs, tag = 'smem constant byte address 0x4 - core index']
  #allocation1 [shape = 'u32[72,128]{1,0:T(1,128)}', space=vmem, size = 0x9000, scoped, tag = 'internal scratch']
  %s0 = inlined_call_operand.vmem [shape: s32[1,64,2], index: 0, kind: input, shape index: {}]
  %s1 = inlined_call_operand.vmem [shape: bf16[128,32], index: 1, kind: input, shape index: {}]
  %s2 = inlined_call_operand.vmem [shape: f32[1,32], index: 2, kind: input, shape index: {}]
  %s3 = inlined_call_operand.vmem [shape: bf16[256,64], index: 3, kind: input, shape index: {}]
  %s4 = inlined_call_operand.vmem [shape: f32[1,64], index: 4, kind: input, shape index: {}]
  %s5 = inlined_call_operand.vmem [shape: bf16[768,128], index: 5, kind: input, shape index: {}]
  %s6 = inlined_call_operand.vmem [shape: f32[1,128], index: 6, kind: input, shape index: {}]
  %s7 = inlined_call_operand.vmem [shape: f32[128,256], index: 7, kind: input, shape index: {}]
  %s8 = inlined_call_operand.vmem [shape: f32[1,256], index: 8, kind: input, shape index: {}]
  %s9 = inlined_call_operand.hbm [shape: f32[2,256], index: 9, kind: output, shape index: {}]
  %s10 = sld [smem:[#allocation0]]
  $region46: #{sequence_protein_forward.1} parent=0
    _
  %s12 = ssub.s32 1, %s10
  %s13 = scalar_select 0, %s12, %s10
  $region1: #{sequence_protein_forward.1} parent=0
    #allocation2 [shape = 'u8[2048]{0}', space=vmem, size = 0x800, scoped, tag = 'output window, operand 0, single buffered']
    #allocation3 [shape = 's32[1]{0}', space=sflag, size = 0x4, scoped, tag = 'scoped memory for sequence_protein_forward.1']
    %14 = vsyncpa [#allocation3], 0
    // Predicated region
    $region2: #{sequence_protein_forward.1} parent=1 // pred_check
      _
    $region3: #{sequence_protein_forward.1} parent=1 // pred_check_branch
      %16 = sbr.rel (0) target = $region5
    $region4: #{sequence_protein_forward.1} parent=1 // pred_region
      _
    $region5: #{sequence_protein_forward.1} parent=1 // pred_fallthru
      _
    // Predicated region
    $region6: #{sequence_protein_forward.1} parent=1 // pred_check
      _
    $region7: #{sequence_protein_forward.1} parent=1 // pred_check_branch
      %18 = sbr.rel (0) target = $region9
    $region8: #{sequence_protein_forward.1} parent=1 // pred_region
      _
    $region9: #{sequence_protein_forward.1} parent=1 // pred_fallthru
      _
    // Predicated region
    $region10: #{sequence_protein_forward.1} parent=1 // pred_check
      _
    $region11: #{sequence_protein_forward.1} parent=1 // pred_check_branch
      %20 = sbr.rel (0) target = $region13
    $region12: #{sequence_protein_forward.1} parent=1 // pred_region
      _
    $region13: #{sequence_protein_forward.1} parent=1 // pred_fallthru
      _
    // Predicated region
    $region14: #{sequence_protein_forward.1} parent=1 // pred_check
      _
    $region15: #{sequence_protein_forward.1} parent=1 // pred_check_branch
      %22 = sbr.rel (0) target = $region17
    $region16: #{sequence_protein_forward.1} parent=1 // pred_region
      _
    $region17: #{sequence_protein_forward.1} parent=1 // pred_fallthru
      _
    // Predicated region
    $region18: #{sequence_protein_forward.1} parent=1 // pred_check
      _
    $region19: #{sequence_protein_forward.1} parent=1 // pred_check_branch
      %24 = sbr.rel (0) target = $region21
    $region20: #{sequence_protein_forward.1} parent=1 // pred_region
      _
    $region21: #{sequence_protein_forward.1} parent=1 // pred_fallthru
      _
    // Predicated region
    $region22: #{sequence_protein_forward.1} parent=1 // pred_check
      _
    $region23: #{sequence_protein_forward.1} parent=1 // pred_check_branch
      %26 = sbr.rel (0) target = $region25
    $region24: #{sequence_protein_forward.1} parent=1 // pred_region
      _
    $region25: #{sequence_protein_forward.1} parent=1 // pred_fallthru
      _
    // Predicated region
    $region26: #{sequence_protein_forward.1} parent=1 // pred_check
      _
    $region27: #{sequence_protein_forward.1} parent=1 // pred_check_branch
      %28 = sbr.rel (0) target = $region29
    $region28: #{sequence_protein_forward.1} parent=1 // pred_region
      _
    $region29: #{sequence_protein_forward.1} parent=1 // pred_fallthru
      _
    // Predicated region
    $region30: #{sequence_protein_forward.1} parent=1 // pred_check
      _
    $region31: #{sequence_protein_forward.1} parent=1 // pred_check_branch
      %30 = sbr.rel (0) target = $region33
    $region32: #{sequence_protein_forward.1} parent=1 // pred_region
      _
    $region33: #{sequence_protein_forward.1} parent=1 // pred_fallthru
      _
    // Predicated region
    $region34: #{sequence_protein_forward.1} parent=1 // pred_check
      _
    $region35: #{sequence_protein_forward.1} parent=1 // pred_check_branch
      %32 = sbr.rel (0) target = $region37
    $region36: #{sequence_protein_forward.1} parent=1 // pred_region
      _
    $region37: #{sequence_protein_forward.1} parent=1 // pred_fallthru
      _
    %v33 = vld [vmem:[%s0] sm:$0xff]
    %v34 = vld [vmem:[%s0 + $0x8] sm:$0xff]
    %v35 = vld [vmem:[%s0 + $0x10] sm:$0xff]
    %v36 = vld [vmem:[%s0 + $0x18] sm:$0xff]
    %v37 = vld [vmem:[%s0 + $0x20] sm:$0xff]
    %v38 = vld [vmem:[%s0 + $0x28] sm:$0xff]
    %v39 = vld [vmem:[%s0 + $0x30] sm:$0xff]
    %v40 = vld [vmem:[%s0 + $0x38] sm:$0xff]
    %v41 = vld [vmem:[%s1] sm:$0xf]
    %v42 = vld [vmem:[%s1 + $0x4] sm:$0xf]
    %v43 = vld [vmem:[%s1 + $0x8] sm:$0xf]
    %v44 = vld [vmem:[%s1 + $0xc] sm:$0xf]
    %v45 = vld [vmem:[%s1 + $0x10] sm:$0xf]
    %v46 = vld [vmem:[%s1 + $0x14] sm:$0xf]
    %v47 = vld [vmem:[%s1 + $0x18] sm:$0xf]
    %v48 = vld [vmem:[%s1 + $0x1c] sm:$0xf]
    %v49 = vld [vmem:[%s1 + $0x20] sm:$0xf]
    %v50 = vld [vmem:[%s1 + $0x24] sm:$0xf]
    %v51 = vld [vmem:[%s1 + $0x28] sm:$0xf]
    %v52 = vld [vmem:[%s1 + $0x2c] sm:$0xf]
    %v53 = vld [vmem:[%s1 + $0x30] sm:$0xf]
    %v54 = vld [vmem:[%s1 + $0x34] sm:$0xf]
    %v55 = vld [vmem:[%s1 + $0x38] sm:$0xf]
    %v56 = vld [vmem:[%s1 + $0x3c] sm:$0xf]
    %v57 = vld [vmem:[%s3] sm:$0xf]
    %v58 = vld [vmem:[%s3 + $0x4] sm:$0xf]
    %v59 = vld [vmem:[%s3 + $0x8] sm:$0xf]
    %v60 = vld [vmem:[%s3 + $0xc] sm:$0xf]
    %v61 = vld [vmem:[%s3 + $0x10] sm:$0xf]
    %v62 = vld [vmem:[%s3 + $0x14] sm:$0xf]
    %v63 = vld [vmem:[%s3 + $0x18] sm:$0xf]
    %v64 = vld [vmem:[%s3 + $0x1c] sm:$0xf]
    %v65 = vld [vmem:[%s3 + $0x20] sm:$0xf]
    %v66 = vld [vmem:[%s3 + $0x24] sm:$0xf]
    %v67 = vld [vmem:[%s3 + $0x28] sm:$0xf]
    %v68 = vld [vmem:[%s3 + $0x2c] sm:$0xf]
    %v69 = vld [vmem:[%s3 + $0x30] sm:$0xf]
    %v70 = vld [vmem:[%s3 + $0x34] sm:$0xf]
    %v71 = vld [vmem:[%s3 + $0x38] sm:$0xf]
    %v72 = vld [vmem:[%s3 + $0x3c] sm:$0xf]
    %v73 = vld [vmem:[%s3 + $0x40] sm:$0xf]
    %v74 = vld [vmem:[%s3 + $0x44] sm:$0xf]
    %v75 = vld [vmem:[%s3 + $0x48] sm:$0xf]
    %v76 = vld [vmem:[%s3 + $0x4c] sm:$0xf]
    %v77 = vld [vmem:[%s3 + $0x50] sm:$0xf]
    %v78 = vld [vmem:[%s3 + $0x54] sm:$0xf]
    %v79 = vld [vmem:[%s3 + $0x58] sm:$0xf]
    %v80 = vld [vmem:[%s3 + $0x5c] sm:$0xf]
    %v81 = vld [vmem:[%s3 + $0x60] sm:$0xf]
    %v82 = vld [vmem:[%s3 + $0x64] sm:$0xf]
    %v83 = vld [vmem:[%s3 + $0x68] sm:$0xf]
    %v84 = vld [vmem:[%s3 + $0x6c] sm:$0xf]
    %v85 = vld [vmem:[%s3 + $0x70] sm:$0xf]
    %v86 = vld [vmem:[%s3 + $0x74] sm:$0xf]
    %v87 = vld [vmem:[%s3 + $0x78] sm:$0xf]
    %v88 = vld [vmem:[%s3 + $0x7c] sm:$0xf]
    %v89 = vld [vmem:[%s5] sm:$0xf]
    %v90 = vld [vmem:[%s5 + $0x4] sm:$0xf]
    %v91 = vld [vmem:[%s5 + $0x8] sm:$0xf]
    %v92 = vld [vmem:[%s5 + $0xc] sm:$0xf]
    %v93 = vld [vmem:[%s5 + $0x10] sm:$0xf]
    %v94 = vld [vmem:[%s5 + $0x14] sm:$0xf]
    %v95 = vld [vmem:[%s5 + $0x18] sm:$0xf]
    %v96 = vld [vmem:[%s5 + $0x1c] sm:$0xf]
    %v97 = vld [vmem:[%s5 + $0x20] sm:$0xf]
    %v98 = vld [vmem:[%s5 + $0x24] sm:$0xf]
    %v99 = vld [vmem:[%s5 + $0x28] sm:$0xf]
    %v100 = vld [vmem:[%s5 + $0x2c] sm:$0xf]
    %v101 = vld [vmem:[%s5 + $0x30] sm:$0xf]
    %v102 = vld [vmem:[%s5 + $0x34] sm:$0xf]
    %v103 = vld [vmem:[%s5 + $0x38] sm:$0xf]
    %v104 = vld [vmem:[%s5 + $0x3c] sm:$0xf]
    %v105 = vld [vmem:[%s5 + $0x40] sm:$0xf]
    %v106 = vld [vmem:[%s5 + $0x44] sm:$0xf]
    %v107 = vld [vmem:[%s5 + $0x48] sm:$0xf]
    %v108 = vld [vmem:[%s5 + $0x4c] sm:$0xf]
    %v109 = vld [vmem:[%s5 + $0x50] sm:$0xf]
    %v110 = vld [vmem:[%s5 + $0x54] sm:$0xf]
    %v111 = vld [vmem:[%s5 + $0x58] sm:$0xf]
    %v112 = vld [vmem:[%s5 + $0x5c] sm:$0xf]
    %v113 = vld [vmem:[%s5 + $0x60] sm:$0xf]
    %v114 = vld [vmem:[%s5 + $0x64] sm:$0xf]
    %v115 = vld [vmem:[%s5 + $0x68] sm:$0xf]
    %v116 = vld [vmem:[%s5 + $0x6c] sm:$0xf]
    %v117 = vld [vmem:[%s5 + $0x70] sm:$0xf]
    %v118 = vld [vmem:[%s5 + $0x74] sm:$0xf]
    %v119 = vld [vmem:[%s5 + $0x78] sm:$0xf]
    %v120 = vld [vmem:[%s5 + $0x7c] sm:$0xf]
    %v121 = vld [vmem:[%s5 + $0x80] sm:$0xf]
    %v122 = vld [vmem:[%s5 + $0x84] sm:$0xf]
    %v123 = vld [vmem:[%s5 + $0x88] sm:$0xf]
    %v124 = vld [vmem:[%s5 + $0x8c] sm:$0xf]
    %v125 = vld [vmem:[%s5 + $0x90] sm:$0xf]
    %v126 = vld [vmem:[%s5 + $0x94] sm:$0xf]
    %v127 = vld [vmem:[%s5 + $0x98] sm:$0xf]
    %v128 = vld [vmem:[%s5 + $0x9c] sm:$0xf]
    %v129 = vld [vmem:[%s5 + $0xa0] sm:$0xf]
    %v130 = vld [vmem:[%s5 + $0xa4] sm:$0xf]
    %v131 = vld [vmem:[%s5 + $0xa8] sm:$0xf]
    %v132 = vld [vmem:[%s5 + $0xac] sm:$0xf]
    %v133 = vld [vmem:[%s5 + $0xb0] sm:$0xf]
    %v134 = vld [vmem:[%s5 + $0xb4] sm:$0xf]
    %v135 = vld [vmem:[%s5 + $0xb8] sm:$0xf]
    %v136 = vld [vmem:[%s5 + $0xbc] sm:$0xf]
    %v137 = vld [vmem:[%s5 + $0xc0] sm:$0xf]
    %v138 = vld [vmem:[%s5 + $0xc4] sm:$0xf]
    %v139 = vld [vmem:[%s5 + $0xc8] sm:$0xf]
    %v140 = vld [vmem:[%s5 + $0xcc] sm:$0xf]
    %v141 = vld [vmem:[%s5 + $0xd0] sm:$0xf]
    %v142 = vld [vmem:[%s5 + $0xd4] sm:$0xf]
    %v143 = vld [vmem:[%s5 + $0xd8] sm:$0xf]
    %v144 = vld [vmem:[%s5 + $0xdc] sm:$0xf]
    %v145 = vld [vmem:[%s5 + $0xe0] sm:$0xf]
    %v146 = vld [vmem:[%s5 + $0xe4] sm:$0xf]
    %v147 = vld [vmem:[%s5 + $0xe8] sm:$0xf]
    %v148 = vld [vmem:[%s5 + $0xec] sm:$0xf]
    %v149 = vld [vmem:[%s5 + $0xf0] sm:$0xf]
    %v150 = vld [vmem:[%s5 + $0xf4] sm:$0xf]
    %v151 = vld [vmem:[%s5 + $0xf8] sm:$0xf]
    %v152 = vld [vmem:[%s5 + $0xfc] sm:$0xf]
    %v153 = vld [vmem:[%s5 + $0x100] sm:$0xf]
    %v154 = vld [vmem:[%s5 + $0x104] sm:$0xf]
    %v155 = vld [vmem:[%s5 + $0x108] sm:$0xf]
    %v156 = vld [vmem:[%s5 + $0x10c] sm:$0xf]
    %v157 = vld [vmem:[%s5 + $0x110] sm:$0xf]
    %v158 = vld [vmem:[%s5 + $0x114] sm:$0xf]
    %v159 = vld [vmem:[%s5 + $0x118] sm:$0xf]
    %v160 = vld [vmem:[%s5 + $0x11c] sm:$0xf]
    %v161 = vld [vmem:[%s5 + $0x120] sm:$0xf]
    %v162 = vld [vmem:[%s5 + $0x124] sm:$0xf]
    %v163 = vld [vmem:[%s5 + $0x128] sm:$0xf]
    %v164 = vld [vmem:[%s5 + $0x12c] sm:$0xf]
    %v165 = vld [vmem:[%s5 + $0x130] sm:$0xf]
    %v166 = vld [vmem:[%s5 + $0x134] sm:$0xf]
    %v167 = vld [vmem:[%s5 + $0x138] sm:$0xf]
    %v168 = vld [vmem:[%s5 + $0x13c] sm:$0xf]
    %v169 = vld [vmem:[%s5 + $0x140] sm:$0xf]
    %v170 = vld [vmem:[%s5 + $0x144] sm:$0xf]
    %v171 = vld [vmem:[%s5 + $0x148] sm:$0xf]
    %v172 = vld [vmem:[%s5 + $0x14c] sm:$0xf]
    %v173 = vld [vmem:[%s5 + $0x150] sm:$0xf]
    %v174 = vld [vmem:[%s5 + $0x154] sm:$0xf]
    %v175 = vld [vmem:[%s5 + $0x158] sm:$0xf]
    %v176 = vld [vmem:[%s5 + $0x15c] sm:$0xf]
    %v177 = vld [vmem:[%s5 + $0x160] sm:$0xf]
    %v178 = vld [vmem:[%s5 + $0x164] sm:$0xf]
    %v179 = vld [vmem:[%s5 + $0x168] sm:$0xf]
    %v180 = vld [vmem:[%s5 + $0x16c] sm:$0xf]
    %v181 = vld [vmem:[%s5 + $0x170] sm:$0xf]
    %v182 = vld [vmem:[%s5 + $0x174] sm:$0xf]
    %v183 = vld [vmem:[%s5 + $0x178] sm:$0xf]
    %v184 = vld [vmem:[%s5 + $0x17c] sm:$0xf]
    %v185 = vld [vmem:[%s2] sm:$0x1]
    %v186 = vld [vmem:[%s4] sm:$0x1]
    %v187 = vld [vmem:[%s6] sm:$0x1]
    %v188 = vlaneseq
    %v189 = vand.u32 %v188, 127
    %190 = vset.pattern.permute.xlu0 0
    %191 = vperm.xlu0 %190, %v33
    %v192 = vpop.permute.xlu0 %191
    %193 = vset.pattern.permute.xlu0 0
    %194 = vperm.xlu0 %193, %v34
    %v195 = vpop.permute.xlu0 %194
    %196 = vset.pattern.permute.xlu0 0
    %197 = vperm.xlu0 %196, %v35
    %v198 = vpop.permute.xlu0 %197
    %199 = vset.pattern.permute.xlu0 0
    %200 = vperm.xlu0 %199, %v36
    %v201 = vpop.permute.xlu0 %200
    %202 = vset.pattern.permute.xlu0 0
    %203 = vperm.xlu0 %202, %v37
    %v204 = vpop.permute.xlu0 %203
    %205 = vset.pattern.permute.xlu0 0
    %206 = vperm.xlu0 %205, %v38
    %v207 = vpop.permute.xlu0 %206
    %208 = vset.pattern.permute.xlu0 0
    %209 = vperm.xlu0 %208, %v39
    %v210 = vpop.permute.xlu0 %209
    %211 = vset.pattern.permute.xlu0 0
    %212 = vperm.xlu0 %211, %v40
    %v213 = vpop.permute.xlu0 %212
    %vm214 = vcmp.eq.s32.totalorder %v192, %v189
    %vm215 = vcmp.eq.s32.totalorder %v195, %v189
    %vm216 = vcmp.eq.s32.totalorder %v198, %v189
    %vm217 = vcmp.eq.s32.totalorder %v201, %v189
    %vm218 = vcmp.eq.s32.totalorder %v204, %v189
    %vm219 = vcmp.eq.s32.totalorder %v207, %v189
    %vm220 = vcmp.eq.s32.totalorder %v210, %v189
    %vm221 = vcmp.eq.s32.totalorder %v213, %v189
    %v222 = vsel %vm214, 1.0, 0.0
    %v223 = vsel %vm215, 1.0, 0.0
    %v224 = vsel %vm216, 1.0, 0.0
    %v225 = vsel %vm217, 1.0, 0.0
    %v226 = vsel %vm218, 1.0, 0.0
    %v227 = vsel %vm219, 1.0, 0.0
    %v228 = vsel %vm220, 1.0, 0.0
    %v229 = vsel %vm221, 1.0, 0.0
    %v230 = vpack.c.bf16 %v222, %v222
    %v231 = vpack.c.bf16 %v223, %v223
    %v232 = vpack.c.bf16 %v224, %v224
    %v233 = vpack.c.bf16 %v225, %v225
    %v234 = vpack.c.bf16 %v226, %v226
    %v235 = vpack.c.bf16 %v227, %v227
    %v236 = vpack.c.bf16 %v228, %v228
    %v237 = vpack.c.bf16 %v229, %v229
    %v246 = vunpack.c.l.b16 %v230
    %v247 = vunpack.c.l.b16 %v231
    %v248 = vunpack.c.l.b16 %v232
    %v249 = vunpack.c.l.b16 %v233
    %v250 = vunpack.c.l.b16 %v234
    %v251 = vunpack.c.l.b16 %v235
    %v252 = vunpack.c.l.b16 %v236
    %v253 = vunpack.c.l.b16 %v237
    %v254 = vpack.c.b16 %v247, %v246
    %v255 = vpack.c.b16 %v249, %v248
    %v256 = vpack.c.b16 %v251, %v250
    %v257 = vpack.c.b16 %v253, %v252
    %vm258 = vsmask.f32 7424
    %v260 = vshrl.u32 %v254, 16
    %v262 = vshll.u32 %v254, 16
    %v264 = vrot.slane %v262, 1
    %v265 = vor.u32 %v260, %v264
    %v267 = vshll.u32 %v255, 16
    %v269 = vrot.slane %v267, 1
    %v270 = vsel %vm258, %v265, %v269
    %v271 = vshrl.u32 %v255, 16
    %v273 = vor.u32 %v271, %v269
    %v275 = vshll.u32 %v256, 16
    %v277 = vrot.slane %v275, 1
    %v278 = vsel %vm258, %v273, %v277
    %v279 = vshrl.u32 %v256, 16
    %v281 = vor.u32 %v279, %v277
    %v283 = vshll.u32 %v257, 16
    %v285 = vrot.slane %v283, 1
    %v286 = vsel %vm258, %v281, %v285
    %v287 = vshrl.u32 %v257, 16
    %v289 = vor.u32 %v287, %v285
    %290 = vrot.lane.b32.xlu0 %v270, 32
    %v291 = vpop.permute.xlu0 %290
    %292 = vrot.lane.b32.xlu0 %v278, 32
    %v293 = vpop.permute.xlu0 %292
    %294 = vrot.lane.b32.xlu0 %v286, 32
    %v295 = vpop.permute.xlu0 %294
    %296 = vrot.lane.b32.xlu0 %v289, 32
    %v297 = vpop.permute.xlu0 %296
    %vm298 = vcmask 1046528
    %v299 = vrot.slane %v254, 1
    %v300 = vrot.slane %v255, 1
    %v301 = vsel %vm298, %v299, %v300
    %v302 = vrot.slane %v256, 1
    %v303 = vsel %vm298, %v300, %v302
    %v304 = vrot.slane %v257, 1
    %v305 = vsel %vm298, %v302, %v304
    %306 = vrot.lane.b32.xlu0 %v301, 64
    %v307 = vpop.permute.xlu0 %306
    %308 = vrot.lane.b32.xlu0 %v303, 64
    %v309 = vpop.permute.xlu0 %308
    %310 = vrot.lane.b32.xlu0 %v305, 64
    %v311 = vpop.permute.xlu0 %310
    %312 = vrot.lane.b32.xlu0 %v304, 64
    %v313 = vpop.permute.xlu0 %312
    %vm314 = vsmask.f32 6400
    %v315 = vrot.slane %v260, 1
    %v316 = vrot.slane %v262, 2
    %v317 = vor.u32 %v315, %v316
    %v318 = vrot.slane %v271, 1
    %v319 = vrot.slane %v267, 2
    %v320 = vor.u32 %v318, %v319
    %v321 = vsel %vm314, %v317, %v320
    %v322 = vrot.slane %v279, 1
    %v323 = vrot.slane %v275, 2
    %v324 = vor.u32 %v322, %v323
    %v325 = vsel %vm314, %v320, %v324
    %v326 = vrot.slane %v287, 1
    %v327 = vrot.slane %v283, 2
    %v328 = vor.u32 %v326, %v327
    %v329 = vsel %vm314, %v324, %v328
    %330 = vrot.lane.b32.xlu0 %v321, 96
    %v331 = vpop.permute.xlu0 %330
    %332 = vrot.lane.b32.xlu0 %v325, 96
    %v333 = vpop.permute.xlu0 %332
    %334 = vrot.lane.b32.xlu0 %v329, 96
    %v335 = vpop.permute.xlu0 %334
    %336 = vrot.lane.b32.xlu0 %v328, 96
    %v337 = vpop.permute.xlu0 %336
    %vm338 = vcmask 261120
    %v340 = vsel %vm338, %v254, %v291
    %v342 = vsel %vm338, %v255, %v293
    %v344 = vsel %vm338, %v256, %v295
    %v346 = vsel %vm338, %v257, %v297
    %vm347 = vcmask 523264
    %v349 = vsel %vm347, %v340, %v307
    %v351 = vsel %vm347, %v342, %v309
    %v353 = vsel %vm347, %v344, %v311
    %v355 = vsel %vm347, %v346, %v313
    %vm356 = vcmask 785408
    %v358 = vsel %vm356, %v349, %v331
    %v361 = vsel %vm356, %v351, %v333
    %v364 = vsel %vm356, %v353, %v335
    %v367 = vsel %vm356, %v355, %v337
    %v370 = vperm.slane %v185, 0
    %v388 = vunpack.c.l.b16 %v41
    %v389 = vunpack.c.l.b16 %v42
    %v390 = vunpack.c.l.b16 %v43
    %v391 = vunpack.c.l.b16 %v44
    %v392 = vunpack.c.l.b16 %v45
    %v393 = vunpack.c.l.b16 %v46
    %v394 = vunpack.c.l.b16 %v47
    %v395 = vunpack.c.l.b16 %v48
    %v396 = vunpack.c.l.b16 %v49
    %v397 = vunpack.c.l.b16 %v50
    %v398 = vunpack.c.l.b16 %v51
    %v399 = vunpack.c.l.b16 %v52
    %v400 = vunpack.c.l.b16 %v53
    %v401 = vunpack.c.l.b16 %v54
    %v402 = vunpack.c.l.b16 %v55
    %v403 = vunpack.c.l.b16 %v56
    %v404 = vpack.c.b16 %v389, %v388
    %v405 = vpack.c.b16 %v391, %v390
    %v406 = vpack.c.b16 %v393, %v392
    %v407 = vpack.c.b16 %v395, %v394
    %v408 = vpack.c.b16 %v397, %v396
    %v409 = vpack.c.b16 %v399, %v398
    %v410 = vpack.c.b16 %v401, %v400
    %v411 = vpack.c.b16 %v403, %v402
    %420 = vmatpush.bf16.msra.mxu0 %v411
    %421 = vmatpush.bf16.msra.mxu0 %v410
    %422 = vmatpush.bf16.msra.mxu0 %v409
    %423 = vmatpush.bf16.msra.mxu0 %v408
    %424 = vmatpush.bf16.msra.mxu0 %v407
    %425 = vmatpush.bf16.msra.mxu0 %v406
    %426 = vmatpush.bf16.msra.mxu0 %v405
    %427 = vmatpush.bf16.msra.mxu0 %v404
    %428 = vmatmul.bf16.gmra.mxu0 %v358
    %v429 = vpop.f32.mrf.mxu0
    %v430 = vadd.f32 %v370, %v429
    %v431 = vpop.f32.mrf.mxu0
    %v432 = vadd.f32 %v370, %v431
    %433 = vmatmul.bf16.gmra.mxu0 %v361
    %v434 = vpop.f32.mrf.mxu0
    %v435 = vadd.f32 %v370, %v434
    %v436 = vpop.f32.mrf.mxu0
    %v437 = vadd.f32 %v370, %v436
    %438 = vmatmul.bf16.gmra.mxu0 %v364
    %v439 = vpop.f32.mrf.mxu0
    %v440 = vadd.f32 %v370, %v439
    %v441 = vpop.f32.mrf.mxu0
    %v442 = vadd.f32 %v370, %v441
    %443 = vmatmul.bf16.gmra.mxu0 %v367
    %v444 = vpop.f32.mrf.mxu0
    %v445 = vadd.f32 %v370, %v444
    %v446 = vpop.f32.mrf.mxu0
    %v447 = vadd.f32 %v370, %v446
    %448 = vdwg.mxu0
    %v449 = vmax.f32 %v430, 0.0
    %v450 = vmax.f32 %v432, 0.0
    %v451 = vmax.f32 %v435, 0.0
    %v452 = vmax.f32 %v437, 0.0
    %v453 = vmax.f32 %v440, 0.0
    %v454 = vmax.f32 %v442, 0.0
    %v455 = vmax.f32 %v445, 0.0
    %v456 = vmax.f32 %v447, 0.0
    %v457 = vpack.c.bf16 %v449, %v449
    %v458 = vpack.c.bf16 %v450, %v450
    %v459 = vpack.c.bf16 %v451, %v451
    %v460 = vpack.c.bf16 %v452, %v452
    %v461 = vpack.c.bf16 %v453, %v453
    %v462 = vpack.c.bf16 %v454, %v454
    %v463 = vpack.c.bf16 %v455, %v455
    %v464 = vpack.c.bf16 %v456, %v456
    %v472 = vunpack.c.l.b16 %v457
    %v473 = vunpack.c.l.b16 %v458
    %v474 = vunpack.c.l.b16 %v459
    %v475 = vunpack.c.l.b16 %v460
    %v476 = vunpack.c.l.b16 %v461
    %v477 = vunpack.c.l.b16 %v462
    %v478 = vunpack.c.l.b16 %v463
    %v479 = vpack.c.b16 %v473, %v472
    %v480 = vpack.c.b16 %v475, %v474
    %v481 = vpack.c.b16 %v477, %v476
    %v482 = vpack.c.b16 %v478, %v478
    %v484 = vshrl.u32 %v479, 16
    %v486 = vshll.u32 %v479, 16
    %v488 = vrot.slane %v486, 1
    %v489 = vor.u32 %v484, %v488
    %v491 = vshll.u32 %v480, 16
    %v493 = vrot.slane %v491, 1
    %v494 = vsel %vm258, %v489, %v493
    %v495 = vshrl.u32 %v480, 16
    %v497 = vor.u32 %v495, %v493
    %v499 = vshll.u32 %v481, 16
    %v501 = vrot.slane %v499, 1
    %v502 = vsel %vm258, %v497, %v501
    %v503 = vshrl.u32 %v481, 16
    %v505 = vor.u32 %v503, %v501
    %v507 = vshll.u32 %v482, 16
    %v509 = vrot.slane %v507, 1
    %v510 = vsel %vm258, %v505, %v509
    %v511 = vshrl.u32 %v482, 16
    %v513 = vor.u32 %v511, %v509
    %514 = vrot.lane.b32.xlu0 %v494, 32
    %v515 = vpop.permute.xlu0 %514
    %516 = vrot.lane.b32.xlu0 %v502, 32
    %v517 = vpop.permute.xlu0 %516
    %518 = vrot.lane.b32.xlu0 %v510, 32
    %v519 = vpop.permute.xlu0 %518
    %520 = vrot.lane.b32.xlu0 %v513, 32
    %v521 = vpop.permute.xlu0 %520
    %v522 = vrot.slane %v479, 1
    %v523 = vrot.slane %v480, 1
    %v524 = vsel %vm298, %v522, %v523
    %v525 = vrot.slane %v481, 1
    %v526 = vsel %vm298, %v523, %v525
    %v527 = vrot.slane %v482, 1
    %v528 = vsel %vm298, %v525, %v527
    %529 = vrot.lane.b32.xlu0 %v524, 64
    %v530 = vpop.permute.xlu0 %529
    %531 = vrot.lane.b32.xlu0 %v526, 64
    %v532 = vpop.permute.xlu0 %531
    %533 = vrot.lane.b32.xlu0 %v528, 64
    %v534 = vpop.permute.xlu0 %533
    %535 = vrot.lane.b32.xlu0 %v527, 64
    %v536 = vpop.permute.xlu0 %535
    %v538 = vunpack.c.l.b16 %v464
    %v539 = vpack.c.b16 %v538, %v478
    %v540 = vrot.slane %v484, 1
    %v541 = vrot.slane %v486, 2
    %v542 = vor.u32 %v540, %v541
    %v543 = vrot.slane %v495, 1
    %v544 = vrot.slane %v491, 2
    %v545 = vor.u32 %v543, %v544
    %v546 = vsel %vm314, %v542, %v545
    %v547 = vrot.slane %v503, 1
    %v548 = vrot.slane %v499, 2
    %v549 = vor.u32 %v547, %v548
    %v550 = vsel %vm314, %v545, %v549
    %v552 = vshrl.u32 %v539, 16
    %v554 = vrot.slane %v552, 1
    %v555 = vshll.u32 %v539, 16
    %v557 = vrot.slane %v555, 2
    %v558 = vor.u32 %v554, %v557
    %v559 = vsel %vm314, %v549, %v558
    %560 = vrot.lane.b32.xlu0 %v546, 96
    %v561 = vpop.permute.xlu0 %560
    %562 = vrot.lane.b32.xlu0 %v550, 96
    %v563 = vpop.permute.xlu0 %562
    %564 = vrot.lane.b32.xlu0 %v559, 96
    %v565 = vpop.permute.xlu0 %564
    %566 = vrot.lane.b32.xlu0 %v558, 96
    %v567 = vpop.permute.xlu0 %566
    %vm568 = vcmask 1045504
    %v569 = vrot.slane %v479, 2
    %v570 = vrot.slane %v480, 2
    %v571 = vsel %vm568, %v569, %v570
    %v572 = vrot.slane %v481, 2
    %v573 = vsel %vm568, %v570, %v572
    %v574 = vrot.slane %v539, 2
    %v575 = vsel %vm568, %v572, %v574
    %vm576 = vsmask.f32 5376
    %v577 = vrot.slane %v484, 2
    %v578 = vrot.slane %v486, 3
    %v579 = vor.u32 %v577, %v578
    %v580 = vrot.slane %v495, 2
    %v581 = vrot.slane %v491, 3
    %v582 = vor.u32 %v580, %v581
    %v583 = vsel %vm576, %v579, %v582
    %v584 = vrot.slane %v503, 2
    %v585 = vrot.slane %v499, 3
    %v586 = vor.u32 %v584, %v585
    %v587 = vsel %vm576, %v582, %v586
    %v588 = vrot.slane %v552, 2
    %v589 = vrot.slane %v555, 3
    %v590 = vor.u32 %v588, %v589
    %v591 = vsel %vm576, %v586, %v590
    %592 = vrot.lane.b32.xlu0 %v583, 32
    %v593 = vpop.permute.xlu0 %592
    %594 = vrot.lane.b32.xlu0 %v587, 32
    %v595 = vpop.permute.xlu0 %594
    %596 = vrot.lane.b32.xlu0 %v591, 32
    %v597 = vpop.permute.xlu0 %596
    %598 = vrot.lane.b32.xlu0 %v590, 32
    %v599 = vpop.permute.xlu0 %598
    %vm600 = vcmask 1044480
    %v601 = vrot.slane %v479, 3
    %v602 = vrot.slane %v480, 3
    %v603 = vsel %vm600, %v601, %v602
    %v604 = vrot.slane %v481, 3
    %v605 = vsel %vm600, %v602, %v604
    %v606 = vrot.slane %v539, 3
    %v607 = vsel %vm600, %v604, %v606
    %608 = vrot.lane.b32.xlu0 %v603, 64
    %v609 = vpop.permute.xlu0 %608
    %610 = vrot.lane.b32.xlu0 %v605, 64
    %v611 = vpop.permute.xlu0 %610
    %612 = vrot.lane.b32.xlu0 %v607, 64
    %v613 = vpop.permute.xlu0 %612
    %614 = vrot.lane.b32.xlu0 %v606, 64
    %v615 = vpop.permute.xlu0 %614
    %vm616 = vsmask.f32 4352
    %v617 = vrot.slane %v484, 3
    %v618 = vrot.slane %v486, 4
    %v619 = vor.u32 %v617, %v618
    %v620 = vrot.slane %v495, 3
    %v621 = vrot.slane %v491, 4
    %v622 = vor.u32 %v620, %v621
    %v623 = vsel %vm616, %v619, %v622
    %v624 = vrot.slane %v503, 3
    %v625 = vrot.slane %v499, 4
    %v626 = vor.u32 %v624, %v625
    %v627 = vsel %vm616, %v622, %v626
    %v628 = vrot.slane %v552, 3
    %v629 = vrot.slane %v555, 4
    %v630 = vor.u32 %v628, %v629
    %v631 = vsel %vm616, %v626, %v630
    %632 = vrot.lane.b32.xlu0 %v623, 96
    %v633 = vpop.permute.xlu0 %632
    %634 = vrot.lane.b32.xlu0 %v627, 96
    %v635 = vpop.permute.xlu0 %634
    %636 = vrot.lane.b32.xlu0 %v631, 96
    %v637 = vpop.permute.xlu0 %636
    %638 = vrot.lane.b32.xlu0 %v630, 96
    %v639 = vpop.permute.xlu0 %638
    %v641 = vsel %vm338, %v479, %v515
    %v643 = vsel %vm338, %v480, %v517
    %v645 = vsel %vm338, %v481, %v519
    %v647 = vsel %vm338, %v482, %v521
    %v649 = vsel %vm347, %v641, %v530
    %v651 = vsel %vm347, %v643, %v532
    %v653 = vsel %vm347, %v645, %v534
    %v655 = vsel %vm347, %v647, %v536
    %v657 = vsel %vm356, %v649, %v561
    %v660 = vsel %vm356, %v651, %v563
    %v663 = vsel %vm356, %v653, %v565
    %v666 = vsel %vm356, %v655, %v567
    %v670 = vsel %vm338, %v571, %v593
    %v673 = vsel %vm338, %v573, %v595
    %v676 = vsel %vm338, %v575, %v597
    %v679 = vsel %vm338, %v574, %v599
    %v681 = vsel %vm347, %v670, %v609
    %v683 = vsel %vm347, %v673, %v611
    %v685 = vsel %vm347, %v676, %v613
    %v687 = vsel %vm347, %v679, %v615
    %v689 = vsel %vm356, %v681, %v633
    %v692 = vsel %vm356, %v683, %v635
    %v695 = vsel %vm356, %v685, %v637
    %v698 = vsel %vm356, %v687, %v639
    %v701 = vperm.slane %v186, 0
    %v735 = vunpack.c.l.b16 %v57
    %v736 = vunpack.c.l.b16 %v58
    %v737 = vunpack.c.l.b16 %v59
    %v738 = vunpack.c.l.b16 %v60
    %v739 = vunpack.c.l.b16 %v61
    %v740 = vunpack.c.l.b16 %v62
    %v741 = vunpack.c.l.b16 %v63
    %v742 = vunpack.c.l.b16 %v64
    %v743 = vunpack.c.l.b16 %v65
    %v744 = vunpack.c.l.b16 %v66
    %v745 = vunpack.c.l.b16 %v67
    %v746 = vunpack.c.l.b16 %v68
    %v747 = vunpack.c.l.b16 %v69
    %v748 = vunpack.c.l.b16 %v70
    %v749 = vunpack.c.l.b16 %v71
    %v750 = vunpack.c.l.b16 %v72
    %v751 = vunpack.c.l.b16 %v73
    %v752 = vunpack.c.l.b16 %v74
    %v753 = vunpack.c.l.b16 %v75
    %v754 = vunpack.c.l.b16 %v76
    %v755 = vunpack.c.l.b16 %v77
    %v756 = vunpack.c.l.b16 %v78
    %v757 = vunpack.c.l.b16 %v79
    %v758 = vunpack.c.l.b16 %v80
    %v759 = vunpack.c.l.b16 %v81
    %v760 = vunpack.c.l.b16 %v82
    %v761 = vunpack.c.l.b16 %v83
    %v762 = vunpack.c.l.b16 %v84
    %v763 = vunpack.c.l.b16 %v85
    %v764 = vunpack.c.l.b16 %v86
    %v765 = vunpack.c.l.b16 %v87
    %v766 = vunpack.c.l.b16 %v88
    %v767 = vpack.c.b16 %v736, %v735
    %v768 = vpack.c.b16 %v738, %v737
    %v769 = vpack.c.b16 %v740, %v739
    %v770 = vpack.c.b16 %v742, %v741
    %v771 = vpack.c.b16 %v744, %v743
    %v772 = vpack.c.b16 %v746, %v745
    %v773 = vpack.c.b16 %v748, %v747
    %v774 = vpack.c.b16 %v750, %v749
    %v775 = vpack.c.b16 %v752, %v751
    %v776 = vpack.c.b16 %v754, %v753
    %v777 = vpack.c.b16 %v756, %v755
    %v778 = vpack.c.b16 %v758, %v757
    %v779 = vpack.c.b16 %v760, %v759
    %v780 = vpack.c.b16 %v762, %v761
    %v781 = vpack.c.b16 %v764, %v763
    %v782 = vpack.c.b16 %v766, %v765
    %799 = vmatpush.bf16.msra.mxu0 %v774
    %800 = vmatpush.bf16.msra.mxu0 %v773
    %801 = vmatpush.bf16.msra.mxu0 %v772
    %802 = vmatpush.bf16.msra.mxu0 %v771
    %803 = vmatpush.bf16.msra.mxu0 %v770
    %804 = vmatpush.bf16.msra.mxu0 %v769
    %805 = vmatpush.bf16.msra.mxu0 %v768
    %806 = vmatpush.bf16.msra.mxu0 %v767
    %807 = vmatmul.bf16.gmra.mxu0 %v657
    %v808 = vpop.f32.mrf.mxu0
    %v809 = vadd.f32 %v701, %v808
    %v810 = vpop.f32.mrf.mxu0
    %v811 = vadd.f32 %v701, %v810
    %812 = vmatmul.bf16.gmra.mxu0 %v660
    %v813 = vpop.f32.mrf.mxu0
    %v814 = vadd.f32 %v701, %v813
    %v815 = vpop.f32.mrf.mxu0
    %v816 = vadd.f32 %v701, %v815
    %817 = vmatmul.bf16.gmra.mxu0 %v663
    %v818 = vpop.f32.mrf.mxu0
    %v819 = vadd.f32 %v701, %v818
    %v820 = vpop.f32.mrf.mxu0
    %v821 = vadd.f32 %v701, %v820
    %822 = vmatmul.bf16.gmra.mxu0 %v666
    %v823 = vpop.f32.mrf.mxu0
    %v824 = vadd.f32 %v701, %v823
    %v825 = vpop.f32.mrf.mxu0
    %826 = vdwg.mxu0
    %827 = vmatpush.bf16.msra.mxu0 %v782
    %828 = vmatpush.bf16.msra.mxu0 %v781
    %829 = vmatpush.bf16.msra.mxu0 %v780
    %830 = vmatpush.bf16.msra.mxu0 %v779
    %831 = vmatpush.bf16.msra.mxu0 %v778
    %832 = vmatpush.bf16.msra.mxu0 %v777
    %833 = vmatpush.bf16.msra.mxu0 %v776
    %834 = vmatpush.bf16.msra.mxu0 %v775
    %835 = vmatmul.bf16.gmra.mxu0 %v689
    %v836 = vpop.f32.mrf.mxu0
    %v837 = vadd.f32 %v809, %v836
    %v838 = vpop.f32.mrf.mxu0
    %v839 = vadd.f32 %v811, %v838
    %840 = vmatmul.bf16.gmra.mxu0 %v692
    %v841 = vpop.f32.mrf.mxu0
    %v842 = vadd.f32 %v814, %v841
    %v843 = vpop.f32.mrf.mxu0
    %v844 = vadd.f32 %v816, %v843
    %845 = vmatmul.bf16.gmra.mxu0 %v695
    %v846 = vpop.f32.mrf.mxu0
    %v847 = vadd.f32 %v819, %v846
    %v848 = vpop.f32.mrf.mxu0
    %v849 = vadd.f32 %v821, %v848
    %850 = vmatmul.bf16.gmra.mxu0 %v698
    %v851 = vpop.f32.mrf.mxu0
    %v852 = vadd.f32 %v824, %v851
    %v853 = vpop.f32.mrf.mxu0
    %854 = vdwg.mxu0
    %v855 = vmax.f32 %v837, 0.0
    %v856 = vmax.f32 %v839, 0.0
    %v857 = vmax.f32 %v842, 0.0
    %v858 = vmax.f32 %v844, 0.0
    %v859 = vmax.f32 %v847, 0.0
    %v860 = vmax.f32 %v849, 0.0
    %v861 = vmax.f32 %v852, 0.0
    %v862 = vpack.c.bf16 %v855, %v855
    %v863 = vpack.c.bf16 %v856, %v856
    %v864 = vpack.c.bf16 %v857, %v857
    %v865 = vpack.c.bf16 %v858, %v858
    %v866 = vpack.c.bf16 %v859, %v859
    %v867 = vpack.c.bf16 %v860, %v860
    %v868 = vpack.c.bf16 %v861, %v861
    %v875 = vunpack.c.l.b16 %v862
    %v876 = vunpack.c.l.b16 %v863
    %v877 = vunpack.c.l.b16 %v864
    %v878 = vunpack.c.l.b16 %v865
    %v879 = vunpack.c.l.b16 %v866
    %v880 = vunpack.c.l.b16 %v867
    %v881 = vpack.c.b16 %v876, %v875
    %v882 = vpack.c.b16 %v878, %v877
    %v883 = vpack.c.b16 %v880, %v879
    %v885 = vshrl.u32 %v881, 16
    %v887 = vshll.u32 %v881, 16
    %v889 = vrot.slane %v887, 1
    %v890 = vor.u32 %v885, %v889
    %v892 = vshll.u32 %v882, 16
    %v894 = vrot.slane %v892, 1
    %v895 = vsel %vm258, %v890, %v894
    %v896 = vshrl.u32 %v882, 16
    %v898 = vor.u32 %v896, %v894
    %v900 = vshll.u32 %v883, 16
    %v902 = vrot.slane %v900, 1
    %v903 = vsel %vm258, %v898, %v902
    %v904 = vshrl.u32 %v883, 16
    %v906 = vor.u32 %v904, %v902
    %907 = vrot.lane.b32.xlu0 %v895, 64
    %v908 = vpop.permute.xlu0 %907
    %909 = vrot.lane.b32.xlu0 %v903, 64
    %v910 = vpop.permute.xlu0 %909
    %911 = vrot.lane.b32.xlu0 %v906, 64
    %v912 = vpop.permute.xlu0 %911
    %v913 = vrot.slane %v881, 1
    %v914 = vrot.slane %v882, 1
    %v915 = vsel %vm298, %v913, %v914
    %v916 = vrot.slane %v883, 1
    %v917 = vsel %vm298, %v914, %v916
    %v918 = vrot.slane %v885, 1
    %v919 = vrot.slane %v887, 2
    %v920 = vor.u32 %v918, %v919
    %v921 = vrot.slane %v896, 1
    %v922 = vrot.slane %v892, 2
    %v923 = vor.u32 %v921, %v922
    %v924 = vsel %vm314, %v920, %v923
    %v925 = vrot.slane %v904, 1
    %v926 = vrot.slane %v900, 2
    %v927 = vor.u32 %v925, %v926
    %v928 = vsel %vm314, %v923, %v927
    %929 = vrot.lane.b32.xlu0 %v924, 64
    %v930 = vpop.permute.xlu0 %929
    %931 = vrot.lane.b32.xlu0 %v928, 64
    %v932 = vpop.permute.xlu0 %931
    %933 = vrot.lane.b32.xlu0 %v927, 64
    %v934 = vpop.permute.xlu0 %933
    %v935 = vrot.slane %v881, 2
    %v936 = vrot.slane %v882, 2
    %v937 = vsel %vm568, %v935, %v936
    %v938 = vrot.slane %v883, 2
    %v939 = vsel %vm568, %v936, %v938
    %v940 = vrot.slane %v885, 2
    %v941 = vrot.slane %v887, 3
    %v942 = vor.u32 %v940, %v941
    %v943 = vrot.slane %v896, 2
    %v944 = vrot.slane %v892, 3
    %v945 = vor.u32 %v943, %v944
    %v946 = vsel %vm576, %v942, %v945
    %v947 = vrot.slane %v904, 2
    %v948 = vrot.slane %v900, 3
    %v949 = vor.u32 %v947, %v948
    %v950 = vsel %vm576, %v945, %v949
    %951 = vrot.lane.b32.xlu0 %v946, 64
    %v952 = vpop.permute.xlu0 %951
    %953 = vrot.lane.b32.xlu0 %v950, 64
    %v954 = vpop.permute.xlu0 %953
    %955 = vrot.lane.b32.xlu0 %v949, 64
    %v956 = vpop.permute.xlu0 %955
    %v958 = vunpack.c.l.b16 %v868
    %v959 = vpack.c.b16 %v958, %v958
    %v960 = vrot.slane %v881, 3
    %v961 = vrot.slane %v882, 3
    %v962 = vsel %vm600, %v960, %v961
    %v963 = vrot.slane %v883, 3
    %v964 = vsel %vm600, %v961, %v963
    %v965 = vrot.slane %v959, 3
    %v966 = vsel %vm600, %v963, %v965
    %v967 = vrot.slane %v885, 3
    %v968 = vrot.slane %v887, 4
    %v969 = vor.u32 %v967, %v968
    %v970 = vrot.slane %v896, 3
    %v971 = vrot.slane %v892, 4
    %v972 = vor.u32 %v970, %v971
    %v973 = vsel %vm616, %v969, %v972
    %v974 = vrot.slane %v904, 3
    %v975 = vrot.slane %v900, 4
    %v976 = vor.u32 %v974, %v975
    %v977 = vsel %vm616, %v972, %v976
    %v979 = vshrl.u32 %v959, 16
    %v981 = vrot.slane %v979, 3
    %v982 = vshll.u32 %v959, 16
    %v984 = vrot.slane %v982, 4
    %v985 = vor.u32 %v981, %v984
    %v986 = vsel %vm616, %v976, %v985
    %987 = vrot.lane.b32.xlu0 %v973, 64
    %v988 = vpop.permute.xlu0 %987
    %989 = vrot.lane.b32.xlu0 %v977, 64
    %v990 = vpop.permute.xlu0 %989
    %991 = vrot.lane.b32.xlu0 %v986, 64
    %v992 = vpop.permute.xlu0 %991
    %v993 = vpack.c.b16 %v877, %v876
    %v994 = vpack.c.b16 %v879, %v878
    %v995 = vpack.c.b16 %v958, %v880
    %v997 = vshrl.u32 %v993, 16
    %v999 = vshll.u32 %v993, 16
    %v1001 = vrot.slane %v999, 1
    %v1002 = vor.u32 %v997, %v1001
    %v1004 = vshll.u32 %v994, 16
    %v1006 = vrot.slane %v1004, 1
    %v1007 = vsel %vm258, %v1002, %v1006
    %v1008 = vshrl.u32 %v994, 16
    %v1010 = vor.u32 %v1008, %v1006
    %v1012 = vshll.u32 %v995, 16
    %v1014 = vrot.slane %v1012, 1
    %v1015 = vsel %vm258, %v1010, %v1014
    %v1016 = vshrl.u32 %v995, 16
    %v1018 = vor.u32 %v1016, %v1014
    %1019 = vrot.lane.b32.xlu0 %v1007, 64
    %v1020 = vpop.permute.xlu0 %1019
    %1021 = vrot.lane.b32.xlu0 %v1015, 64
    %v1022 = vpop.permute.xlu0 %1021
    %1023 = vrot.lane.b32.xlu0 %v1018, 64
    %v1024 = vpop.permute.xlu0 %1023
    %v1025 = vrot.slane %v993, 1
    %v1026 = vrot.slane %v994, 1
    %v1027 = vsel %vm298, %v1025, %v1026
    %v1028 = vrot.slane %v995, 1
    %v1029 = vsel %vm298, %v1026, %v1028
    %v1030 = vrot.slane %v997, 1
    %v1031 = vrot.slane %v999, 2
    %v1032 = vor.u32 %v1030, %v1031
    %v1033 = vrot.slane %v1008, 1
    %v1034 = vrot.slane %v1004, 2
    %v1035 = vor.u32 %v1033, %v1034
    %v1036 = vsel %vm314, %v1032, %v1035
    %v1037 = vrot.slane %v1016, 1
    %v1038 = vrot.slane %v1012, 2
    %v1039 = vor.u32 %v1037, %v1038
    %v1040 = vsel %vm314, %v1035, %v1039
    %1041 = vrot.lane.b32.xlu0 %v1036, 64
    %v1042 = vpop.permute.xlu0 %1041
    %1043 = vrot.lane.b32.xlu0 %v1040, 64
    %v1044 = vpop.permute.xlu0 %1043
    %1045 = vrot.lane.b32.xlu0 %v1039, 64
    %v1046 = vpop.permute.xlu0 %1045
    %v1048 = vsel %vm347, %v881, %v908
    %v1051 = vsel %vm347, %v882, %v910
    %v1054 = vsel %vm347, %v883, %v912
    %v1058 = vsel %vm347, %v915, %v930
    %v1062 = vsel %vm347, %v917, %v932
    %v1066 = vsel %vm347, %v916, %v934
    %v1070 = vsel %vm347, %v937, %v952
    %v1074 = vsel %vm347, %v939, %v954
    %v1078 = vsel %vm347, %v938, %v956
    %v1082 = vsel %vm347, %v962, %v988
    %v1086 = vsel %vm347, %v964, %v990
    %v1090 = vsel %vm347, %v966, %v992
    %v1093 = vsel %vm347, %v993, %v1020
    %v1096 = vsel %vm347, %v994, %v1022
    %v1099 = vsel %vm347, %v995, %v1024
    %v1103 = vsel %vm347, %v1027, %v1042
    %v1107 = vsel %vm347, %v1029, %v1044
    %v1111 = vsel %vm347, %v1028, %v1046
    %v1114 = vperm.slane %v187, 0
    %v1212 = vunpack.c.l.b16 %v89
    %v1213 = vunpack.c.l.b16 %v90
    %v1214 = vunpack.c.l.b16 %v91
    %v1215 = vunpack.c.l.b16 %v92
    %v1216 = vunpack.c.l.b16 %v93
    %v1217 = vunpack.c.l.b16 %v94
    %v1218 = vunpack.c.l.b16 %v95
    %v1219 = vunpack.c.l.b16 %v96
    %v1220 = vunpack.c.l.b16 %v97
    %v1221 = vunpack.c.l.b16 %v98
    %v1222 = vunpack.c.l.b16 %v99
    %v1223 = vunpack.c.l.b16 %v100
    %v1224 = vunpack.c.l.b16 %v101
    %v1225 = vunpack.c.l.b16 %v102
    %v1226 = vunpack.c.l.b16 %v103
    %v1227 = vunpack.c.l.b16 %v104
    %v1228 = vunpack.c.l.b16 %v105
    %v1229 = vunpack.c.l.b16 %v106
    %v1230 = vunpack.c.l.b16 %v107
    %v1231 = vunpack.c.l.b16 %v108
    %v1232 = vunpack.c.l.b16 %v109
    %v1233 = vunpack.c.l.b16 %v110
    %v1234 = vunpack.c.l.b16 %v111
    %v1235 = vunpack.c.l.b16 %v112
    %v1236 = vunpack.c.l.b16 %v113
    %v1237 = vunpack.c.l.b16 %v114
    %v1238 = vunpack.c.l.b16 %v115
    %v1239 = vunpack.c.l.b16 %v116
    %v1240 = vunpack.c.l.b16 %v117
    %v1241 = vunpack.c.l.b16 %v118
    %v1242 = vunpack.c.l.b16 %v119
    %v1243 = vunpack.c.l.b16 %v120
    %v1244 = vunpack.c.l.b16 %v121
    %v1245 = vunpack.c.l.b16 %v122
    %v1246 = vunpack.c.l.b16 %v123
    %v1247 = vunpack.c.l.b16 %v124
    %v1248 = vunpack.c.l.b16 %v125
    %v1249 = vunpack.c.l.b16 %v126
    %v1250 = vunpack.c.l.b16 %v127
    %v1251 = vunpack.c.l.b16 %v128
    %v1252 = vunpack.c.l.b16 %v129
    %v1253 = vunpack.c.l.b16 %v130
    %v1254 = vunpack.c.l.b16 %v131
    %v1255 = vunpack.c.l.b16 %v132
    %v1256 = vunpack.c.l.b16 %v133
    %v1257 = vunpack.c.l.b16 %v134
    %v1258 = vunpack.c.l.b16 %v135
    %v1259 = vunpack.c.l.b16 %v136
    %v1260 = vunpack.c.l.b16 %v137
    %v1261 = vunpack.c.l.b16 %v138
    %v1262 = vunpack.c.l.b16 %v139
    %v1263 = vunpack.c.l.b16 %v140
    %v1264 = vunpack.c.l.b16 %v141
    %v1265 = vunpack.c.l.b16 %v142
    %v1266 = vunpack.c.l.b16 %v143
    %v1267 = vunpack.c.l.b16 %v144
    %v1268 = vunpack.c.l.b16 %v145
    %v1269 = vunpack.c.l.b16 %v146
    %v1270 = vunpack.c.l.b16 %v147
    %v1271 = vunpack.c.l.b16 %v148
    %v1272 = vunpack.c.l.b16 %v149
    %v1273 = vunpack.c.l.b16 %v150
    %v1274 = vunpack.c.l.b16 %v151
    %v1275 = vunpack.c.l.b16 %v152
    %v1276 = vunpack.c.l.b16 %v153
    %v1277 = vunpack.c.l.b16 %v154
    %v1278 = vunpack.c.l.b16 %v155
    %v1279 = vunpack.c.l.b16 %v156
    %v1280 = vunpack.c.l.b16 %v157
    %v1281 = vunpack.c.l.b16 %v158
    %v1282 = vunpack.c.l.b16 %v159
    %v1283 = vunpack.c.l.b16 %v160
    %v1284 = vunpack.c.l.b16 %v161
    %v1285 = vunpack.c.l.b16 %v162
    %v1286 = vunpack.c.l.b16 %v163
    %v1287 = vunpack.c.l.b16 %v164
    %v1288 = vunpack.c.l.b16 %v165
    %v1289 = vunpack.c.l.b16 %v166
    %v1290 = vunpack.c.l.b16 %v167
    %v1291 = vunpack.c.l.b16 %v168
    %v1292 = vunpack.c.l.b16 %v169
    %v1293 = vunpack.c.l.b16 %v170
    %v1294 = vunpack.c.l.b16 %v171
    %v1295 = vunpack.c.l.b16 %v172
    %v1296 = vunpack.c.l.b16 %v173
    %v1297 = vunpack.c.l.b16 %v174
    %v1298 = vunpack.c.l.b16 %v175
    %v1299 = vunpack.c.l.b16 %v176
    %v1300 = vunpack.c.l.b16 %v177
    %v1301 = vunpack.c.l.b16 %v178
    %v1302 = vunpack.c.l.b16 %v179
    %v1303 = vunpack.c.l.b16 %v180
    %v1304 = vunpack.c.l.b16 %v181
    %v1305 = vunpack.c.l.b16 %v182
    %v1306 = vunpack.c.l.b16 %v183
    %v1307 = vunpack.c.l.b16 %v184
    %v1308 = vpack.c.b16 %v1213, %v1212
    %v1309 = vpack.c.b16 %v1215, %v1214
    %v1310 = vpack.c.b16 %v1217, %v1216
    %v1311 = vpack.c.b16 %v1219, %v1218
    %v1312 = vpack.c.b16 %v1221, %v1220
    %v1313 = vpack.c.b16 %v1223, %v1222
    %v1314 = vpack.c.b16 %v1225, %v1224
    %v1315 = vpack.c.b16 %v1227, %v1226
    %v1316 = vpack.c.b16 %v1229, %v1228
    %v1317 = vpack.c.b16 %v1231, %v1230
    %v1318 = vpack.c.b16 %v1233, %v1232
    %v1319 = vpack.c.b16 %v1235, %v1234
    %v1320 = vpack.c.b16 %v1237, %v1236
    %v1321 = vpack.c.b16 %v1239, %v1238
    %v1322 = vpack.c.b16 %v1241, %v1240
    %v1323 = vpack.c.b16 %v1243, %v1242
    %v1324 = vpack.c.b16 %v1245, %v1244
    %v1325 = vpack.c.b16 %v1247, %v1246
    %v1326 = vpack.c.b16 %v1249, %v1248
    %v1327 = vpack.c.b16 %v1251, %v1250
    %v1328 = vpack.c.b16 %v1253, %v1252
    %v1329 = vpack.c.b16 %v1255, %v1254
    %v1330 = vpack.c.b16 %v1257, %v1256
    %v1331 = vpack.c.b16 %v1259, %v1258
    %v1332 = vpack.c.b16 %v1261, %v1260
    %v1333 = vpack.c.b16 %v1263, %v1262
    %v1334 = vpack.c.b16 %v1265, %v1264
    %v1335 = vpack.c.b16 %v1267, %v1266
    %v1336 = vpack.c.b16 %v1269, %v1268
    %v1337 = vpack.c.b16 %v1271, %v1270
    %v1338 = vpack.c.b16 %v1273, %v1272
    %v1339 = vpack.c.b16 %v1275, %v1274
    %v1340 = vpack.c.b16 %v1277, %v1276
    %v1341 = vpack.c.b16 %v1279, %v1278
    %v1342 = vpack.c.b16 %v1281, %v1280
    %v1343 = vpack.c.b16 %v1283, %v1282
    %v1344 = vpack.c.b16 %v1285, %v1284
    %v1345 = vpack.c.b16 %v1287, %v1286
    %v1346 = vpack.c.b16 %v1289, %v1288
    %v1347 = vpack.c.b16 %v1291, %v1290
    %v1348 = vpack.c.b16 %v1293, %v1292
    %v1349 = vpack.c.b16 %v1295, %v1294
    %v1350 = vpack.c.b16 %v1297, %v1296
    %v1351 = vpack.c.b16 %v1299, %v1298
    %v1352 = vpack.c.b16 %v1301, %v1300
    %v1353 = vpack.c.b16 %v1303, %v1302
    %v1354 = vpack.c.b16 %v1305, %v1304
    %v1355 = vpack.c.b16 %v1307, %v1306
    %1404 = vmatpush.bf16.msra.mxu0 %v1315
    %1405 = vmatpush.bf16.msra.mxu0 %v1314
    %1406 = vmatpush.bf16.msra.mxu0 %v1313
    %1407 = vmatpush.bf16.msra.mxu0 %v1312
    %1408 = vmatpush.bf16.msra.mxu0 %v1311
    %1409 = vmatpush.bf16.msra.mxu0 %v1310
    %1410 = vmatpush.bf16.msra.mxu0 %v1309
    %1411 = vmatpush.bf16.msra.mxu0 %v1308
    %1412 = vmatmul.bf16.gmra.mxu0 %v1048
    %v1413 = vpop.f32.mrf.mxu0
    %v1414 = vadd.f32 %v1114, %v1413
    %v1415 = vpop.f32.mrf.mxu0
    %v1416 = vadd.f32 %v1114, %v1415
    %1417 = vmatmul.bf16.gmra.mxu0 %v1051
    %v1418 = vpop.f32.mrf.mxu0
    %v1419 = vadd.f32 %v1114, %v1418
    %v1420 = vpop.f32.mrf.mxu0
    %v1421 = vadd.f32 %v1114, %v1420
    %1422 = vmatmul.bf16.gmra.mxu0 %v1054
    %v1423 = vpop.f32.mrf.mxu0
    %v1424 = vadd.f32 %v1114, %v1423
    %v1425 = vpop.f32.mrf.mxu0
    %v1426 = vadd.f32 %v1114, %v1425
    %1427 = vdwg.mxu0
    %1428 = vmatpush.bf16.msra.mxu0 %v1323
    %1429 = vmatpush.bf16.msra.mxu0 %v1322
    %1430 = vmatpush.bf16.msra.mxu0 %v1321
    %1431 = vmatpush.bf16.msra.mxu0 %v1320
    %1432 = vmatpush.bf16.msra.mxu0 %v1319
    %1433 = vmatpush.bf16.msra.mxu0 %v1318
    %1434 = vmatpush.bf16.msra.mxu0 %v1317
    %1435 = vmatpush.bf16.msra.mxu0 %v1316
    %1436 = vmatmul.bf16.gmra.mxu0 %v1058
    %v1437 = vpop.f32.mrf.mxu0
    %v1438 = vadd.f32 %v1414, %v1437
    %v1439 = vpop.f32.mrf.mxu0
    %v1440 = vadd.f32 %v1416, %v1439
    %1441 = vmatmul.bf16.gmra.mxu0 %v1062
    %v1442 = vpop.f32.mrf.mxu0
    %v1443 = vadd.f32 %v1419, %v1442
    %v1444 = vpop.f32.mrf.mxu0
    %v1445 = vadd.f32 %v1421, %v1444
    %1446 = vmatmul.bf16.gmra.mxu0 %v1066
    %v1447 = vpop.f32.mrf.mxu0
    %v1448 = vadd.f32 %v1424, %v1447
    %v1449 = vpop.f32.mrf.mxu0
    %v1450 = vadd.f32 %v1426, %v1449
    %1451 = vdwg.mxu0
    %1452 = vmatpush.bf16.msra.mxu0 %v1331
    %1453 = vmatpush.bf16.msra.mxu0 %v1330
    %1454 = vmatpush.bf16.msra.mxu0 %v1329
    %1455 = vmatpush.bf16.msra.mxu0 %v1328
    %1456 = vmatpush.bf16.msra.mxu0 %v1327
    %1457 = vmatpush.bf16.msra.mxu0 %v1326
    %1458 = vmatpush.bf16.msra.mxu0 %v1325
    %1459 = vmatpush.bf16.msra.mxu0 %v1324
    %1460 = vmatmul.bf16.gmra.mxu0 %v1070
    %v1461 = vpop.f32.mrf.mxu0
    %v1462 = vadd.f32 %v1438, %v1461
    %v1463 = vpop.f32.mrf.mxu0
    %v1464 = vadd.f32 %v1440, %v1463
    %1465 = vmatmul.bf16.gmra.mxu0 %v1074
    %v1466 = vpop.f32.mrf.mxu0
    %v1467 = vadd.f32 %v1443, %v1466
    %v1468 = vpop.f32.mrf.mxu0
    %v1469 = vadd.f32 %v1445, %v1468
    %1470 = vmatmul.bf16.gmra.mxu0 %v1078
    %v1471 = vpop.f32.mrf.mxu0
    %v1472 = vadd.f32 %v1448, %v1471
    %v1473 = vpop.f32.mrf.mxu0
    %v1474 = vadd.f32 %v1450, %v1473
    %1475 = vdwg.mxu0
    %1476 = vmatpush.bf16.msra.mxu0 %v1339
    %1477 = vmatpush.bf16.msra.mxu0 %v1338
    %1478 = vmatpush.bf16.msra.mxu0 %v1337
    %1479 = vmatpush.bf16.msra.mxu0 %v1336
    %1480 = vmatpush.bf16.msra.mxu0 %v1335
    %1481 = vmatpush.bf16.msra.mxu0 %v1334
    %1482 = vmatpush.bf16.msra.mxu0 %v1333
    %1483 = vmatpush.bf16.msra.mxu0 %v1332
    %1484 = vmatmul.bf16.gmra.mxu0 %v1082
    %v1485 = vpop.f32.mrf.mxu0
    %v1486 = vadd.f32 %v1462, %v1485
    %v1487 = vpop.f32.mrf.mxu0
    %v1488 = vadd.f32 %v1464, %v1487
    %1489 = vmatmul.bf16.gmra.mxu0 %v1086
    %v1490 = vpop.f32.mrf.mxu0
    %v1491 = vadd.f32 %v1467, %v1490
    %v1492 = vpop.f32.mrf.mxu0
    %v1493 = vadd.f32 %v1469, %v1492
    %1494 = vmatmul.bf16.gmra.mxu0 %v1090
    %v1495 = vpop.f32.mrf.mxu0
    %v1496 = vadd.f32 %v1472, %v1495
    %v1497 = vpop.f32.mrf.mxu0
    %v1498 = vadd.f32 %v1474, %v1497
    %1499 = vdwg.mxu0
    %1500 = vmatpush.bf16.msra.mxu0 %v1347
    %1501 = vmatpush.bf16.msra.mxu0 %v1346
    %1502 = vmatpush.bf16.msra.mxu0 %v1345
    %1503 = vmatpush.bf16.msra.mxu0 %v1344
    %1504 = vmatpush.bf16.msra.mxu0 %v1343
    %1505 = vmatpush.bf16.msra.mxu0 %v1342
    %1506 = vmatpush.bf16.msra.mxu0 %v1341
    %1507 = vmatpush.bf16.msra.mxu0 %v1340
    %1508 = vmatmul.bf16.gmra.mxu0 %v1093
    %v1509 = vpop.f32.mrf.mxu0
    %v1510 = vadd.f32 %v1486, %v1509
    %v1511 = vpop.f32.mrf.mxu0
    %v1512 = vadd.f32 %v1488, %v1511
    %1513 = vmatmul.bf16.gmra.mxu0 %v1096
    %v1514 = vpop.f32.mrf.mxu0
    %v1515 = vadd.f32 %v1491, %v1514
    %v1516 = vpop.f32.mrf.mxu0
    %v1517 = vadd.f32 %v1493, %v1516
    %1518 = vmatmul.bf16.gmra.mxu0 %v1099
    %v1519 = vpop.f32.mrf.mxu0
    %v1520 = vadd.f32 %v1496, %v1519
    %v1521 = vpop.f32.mrf.mxu0
    %v1522 = vadd.f32 %v1498, %v1521
    %1523 = vdwg.mxu0
    %1524 = vmatpush.bf16.msra.mxu0 %v1355
    %1525 = vmatpush.bf16.msra.mxu0 %v1354
    %1526 = vmatpush.bf16.msra.mxu0 %v1353
    %1527 = vmatpush.bf16.msra.mxu0 %v1352
    %1528 = vmatpush.bf16.msra.mxu0 %v1351
    %1529 = vmatpush.bf16.msra.mxu0 %v1350
    %1530 = vmatpush.bf16.msra.mxu0 %v1349
    %1531 = vmatpush.bf16.msra.mxu0 %v1348
    %1532 = vmatmul.bf16.gmra.mxu0 %v1103
    %v1533 = vpop.f32.mrf.mxu0
    %v1534 = vadd.f32 %v1510, %v1533
    %v1535 = vpop.f32.mrf.mxu0
    %v1536 = vadd.f32 %v1512, %v1535
    %1537 = vmatmul.bf16.gmra.mxu0 %v1107
    %v1538 = vpop.f32.mrf.mxu0
    %v1539 = vadd.f32 %v1515, %v1538
    %v1540 = vpop.f32.mrf.mxu0
    %v1541 = vadd.f32 %v1517, %v1540
    %1542 = vmatmul.bf16.gmra.mxu0 %v1111
    %v1543 = vpop.f32.mrf.mxu0
    %v1544 = vadd.f32 %v1520, %v1543
    %v1545 = vpop.f32.mrf.mxu0
    %v1546 = vadd.f32 %v1522, %v1545
    %1547 = vdwg.mxu0
    %v1548 = vmax.f32 %v1534, 0.0
    %v1549 = vmax.f32 %v1536, 0.0
    %v1550 = vmax.f32 %v1539, 0.0
    %v1551 = vmax.f32 %v1541, 0.0
    %v1552 = vmax.f32 %v1544, 0.0
    %v1553 = vmax.f32 %v1546, 0.0
    %v1554 = vmax.f32 %v1548, %v1552
    %vm1555 = vcmask 1042432
    %v1556 = vsel %vm1555, %v1553, -inf
    %v1557 = vmax.f32 %v1549, %v1556
    %v1558 = vmax.f32 %v1554, %v1557
    %v1559 = vmax.f32 %v1550, %v1551
    %v1560 = vmax.f32 %v1558, %v1559
    %v1561 = vrot.slane %v1560, 4
    %v1562 = vmax.f32 %v1560, %v1561
    %v1563 = vrot.slane %v1562, 2
    %v1564 = vmax.f32 %v1562, %v1563
    %v1565 = vrot.slane %v1564, 1
    %v1566 = vmax.f32 %v1564, %v1565
    %1567 = vset.pattern.permute.xlu0 1
    %1568 = vperm.xlu0 %1567, %v33
    %v1569 = vpop.permute.xlu0 %1568
    %1570 = vset.pattern.permute.xlu0 1
    %1571 = vperm.xlu0 %1570, %v34
    %v1572 = vpop.permute.xlu0 %1571
    %1573 = vset.pattern.permute.xlu0 1
    %1574 = vperm.xlu0 %1573, %v35
    %v1575 = vpop.permute.xlu0 %1574
    %1576 = vset.pattern.permute.xlu0 1
    %1577 = vperm.xlu0 %1576, %v36
    %v1578 = vpop.permute.xlu0 %1577
    %1579 = vset.pattern.permute.xlu0 1
    %1580 = vperm.xlu0 %1579, %v37
    %v1581 = vpop.permute.xlu0 %1580
    %1582 = vset.pattern.permute.xlu0 1
    %1583 = vperm.xlu0 %1582, %v38
    %v1584 = vpop.permute.xlu0 %1583
    %1585 = vset.pattern.permute.xlu0 1
    %1586 = vperm.xlu0 %1585, %v39
    %v1587 = vpop.permute.xlu0 %1586
    %1588 = vset.pattern.permute.xlu0 1
    %1589 = vperm.xlu0 %1588, %v40
    %v1590 = vpop.permute.xlu0 %1589
    %vm1591 = vcmp.eq.s32.totalorder %v1569, %v189
    %vm1592 = vcmp.eq.s32.totalorder %v1572, %v189
    %vm1593 = vcmp.eq.s32.totalorder %v1575, %v189
    %vm1594 = vcmp.eq.s32.totalorder %v1578, %v189
    %vm1595 = vcmp.eq.s32.totalorder %v1581, %v189
    %vm1596 = vcmp.eq.s32.totalorder %v1584, %v189
    %vm1597 = vcmp.eq.s32.totalorder %v1587, %v189
    %vm1598 = vcmp.eq.s32.totalorder %v1590, %v189
    %v1599 = vsel %vm1591, 1.0, 0.0
    %v1600 = vsel %vm1592, 1.0, 0.0
    %v1601 = vsel %vm1593, 1.0, 0.0
    %v1602 = vsel %vm1594, 1.0, 0.0
    %v1603 = vsel %vm1595, 1.0, 0.0
    %v1604 = vsel %vm1596, 1.0, 0.0
    %v1605 = vsel %vm1597, 1.0, 0.0
    %v1606 = vsel %vm1598, 1.0, 0.0
    %v1607 = vpack.c.bf16 %v1599, %v1599
    %v1608 = vpack.c.bf16 %v1600, %v1600
    %v1609 = vpack.c.bf16 %v1601, %v1601
    %v1610 = vpack.c.bf16 %v1602, %v1602
    %v1611 = vpack.c.bf16 %v1603, %v1603
    %v1612 = vpack.c.bf16 %v1604, %v1604
    %v1613 = vpack.c.bf16 %v1605, %v1605
    %v1614 = vpack.c.bf16 %v1606, %v1606
    %v1623 = vunpack.c.l.b16 %v1607
    %v1624 = vunpack.c.l.b16 %v1608
    %v1625 = vunpack.c.l.b16 %v1609
    %v1626 = vunpack.c.l.b16 %v1610
    %v1627 = vunpack.c.l.b16 %v1611
    %v1628 = vunpack.c.l.b16 %v1612
    %v1629 = vunpack.c.l.b16 %v1613
    %v1630 = vunpack.c.l.b16 %v1614
    %v1631 = vpack.c.b16 %v1624, %v1623
    %v1632 = vpack.c.b16 %v1626, %v1625
    %v1633 = vpack.c.b16 %v1628, %v1627
    %v1634 = vpack.c.b16 %v1630, %v1629
    %v1636 = vshrl.u32 %v1631, 16
    %v1638 = vshll.u32 %v1631, 16
    %v1640 = vrot.slane %v1638, 1
    %v1641 = vor.u32 %v1636, %v1640
    %v1643 = vshll.u32 %v1632, 16
    %v1645 = vrot.slane %v1643, 1
    %v1646 = vsel %vm258, %v1641, %v1645
    %v1647 = vshrl.u32 %v1632, 16
    %v1649 = vor.u32 %v1647, %v1645
    %v1651 = vshll.u32 %v1633, 16
    %v1653 = vrot.slane %v1651, 1
    %v1654 = vsel %vm258, %v1649, %v1653
    %v1655 = vshrl.u32 %v1633, 16
    %v1657 = vor.u32 %v1655, %v1653
    %v1659 = vshll.u32 %v1634, 16
    %v1661 = vrot.slane %v1659, 1
    %v1662 = vsel %vm258, %v1657, %v1661
    %v1663 = vshrl.u32 %v1634, 16
    %v1665 = vor.u32 %v1663, %v1661
    %1666 = vrot.lane.b32.xlu0 %v1646, 32
    %v1667 = vpop.permute.xlu0 %1666
    %1668 = vrot.lane.b32.xlu0 %v1654, 32
    %v1669 = vpop.permute.xlu0 %1668
    %1670 = vrot.lane.b32.xlu0 %v1662, 32
    %v1671 = vpop.permute.xlu0 %1670
    %1672 = vrot.lane.b32.xlu0 %v1665, 32
    %v1673 = vpop.permute.xlu0 %1672
    %v1674 = vrot.slane %v1631, 1
    %v1675 = vrot.slane %v1632, 1
    %v1676 = vsel %vm298, %v1674, %v1675
    %v1677 = vrot.slane %v1633, 1
    %v1678 = vsel %vm298, %v1675, %v1677
    %v1679 = vrot.slane %v1634, 1
    %v1680 = vsel %vm298, %v1677, %v1679
    %1681 = vrot.lane.b32.xlu0 %v1676, 64
    %v1682 = vpop.permute.xlu0 %1681
    %1683 = vrot.lane.b32.xlu0 %v1678, 64
    %v1684 = vpop.permute.xlu0 %1683
    %1685 = vrot.lane.b32.xlu0 %v1680, 64
    %v1686 = vpop.permute.xlu0 %1685
    %1687 = vrot.lane.b32.xlu0 %v1679, 64
    %v1688 = vpop.permute.xlu0 %1687
    %v1689 = vrot.slane %v1636, 1
    %v1690 = vrot.slane %v1638, 2
    %v1691 = vor.u32 %v1689, %v1690
    %v1692 = vrot.slane %v1647, 1
    %v1693 = vrot.slane %v1643, 2
    %v1694 = vor.u32 %v1692, %v1693
    %v1695 = vsel %vm314, %v1691, %v1694
    %v1696 = vrot.slane %v1655, 1
    %v1697 = vrot.slane %v1651, 2
    %v1698 = vor.u32 %v1696, %v1697
    %v1699 = vsel %vm314, %v1694, %v1698
    %v1700 = vrot.slane %v1663, 1
    %v1701 = vrot.slane %v1659, 2
    %v1702 = vor.u32 %v1700, %v1701
    %v1703 = vsel %vm314, %v1698, %v1702
    %1704 = vrot.lane.b32.xlu0 %v1695, 96
    %v1705 = vpop.permute.xlu0 %1704
    %1706 = vrot.lane.b32.xlu0 %v1699, 96
    %v1707 = vpop.permute.xlu0 %1706
    %1708 = vrot.lane.b32.xlu0 %v1703, 96
    %v1709 = vpop.permute.xlu0 %1708
    %1710 = vrot.lane.b32.xlu0 %v1702, 96
    %v1711 = vpop.permute.xlu0 %1710
    %v1713 = vsel %vm338, %v1631, %v1667
    %v1715 = vsel %vm338, %v1632, %v1669
    %v1717 = vsel %vm338, %v1633, %v1671
    %v1719 = vsel %vm338, %v1634, %v1673
    %v1721 = vsel %vm347, %v1713, %v1682
    %v1723 = vsel %vm347, %v1715, %v1684
    %v1725 = vsel %vm347, %v1717, %v1686
    %v1727 = vsel %vm347, %v1719, %v1688
    %v1729 = vsel %vm356, %v1721, %v1705
    %v1732 = vsel %vm356, %v1723, %v1707
    %v1735 = vsel %vm356, %v1725, %v1709
    %v1738 = vsel %vm356, %v1727, %v1711
    %1740 = vmatpush.bf16.msra.mxu0 %v411
    %1741 = vmatpush.bf16.msra.mxu0 %v410
    %1742 = vmatpush.bf16.msra.mxu0 %v409
    %1743 = vmatpush.bf16.msra.mxu0 %v408
    %1744 = vmatpush.bf16.msra.mxu0 %v407
    %1745 = vmatpush.bf16.msra.mxu0 %v406
    %1746 = vmatpush.bf16.msra.mxu0 %v405
    %1747 = vmatpush.bf16.msra.mxu0 %v404
    %1748 = vmatmul.bf16.gmra.mxu0 %v1729
    %v1749 = vpop.f32.mrf.mxu0
    %v1750 = vadd.f32 %v370, %v1749
    %v1751 = vpop.f32.mrf.mxu0
    %v1752 = vadd.f32 %v370, %v1751
    %1753 = vmatmul.bf16.gmra.mxu0 %v1732
    %v1754 = vpop.f32.mrf.mxu0
    %v1755 = vadd.f32 %v370, %v1754
    %v1756 = vpop.f32.mrf.mxu0
    %v1757 = vadd.f32 %v370, %v1756
    %1758 = vmatmul.bf16.gmra.mxu0 %v1735
    %v1759 = vpop.f32.mrf.mxu0
    %v1760 = vadd.f32 %v370, %v1759
    %v1761 = vpop.f32.mrf.mxu0
    %v1762 = vadd.f32 %v370, %v1761
    %1763 = vmatmul.bf16.gmra.mxu0 %v1738
    %v1764 = vpop.f32.mrf.mxu0
    %v1765 = vadd.f32 %v370, %v1764
    %v1766 = vpop.f32.mrf.mxu0
    %v1767 = vadd.f32 %v370, %v1766
    %1768 = vdwg.mxu0
    %v1769 = vmax.f32 %v1750, 0.0
    %v1770 = vmax.f32 %v1752, 0.0
    %v1771 = vmax.f32 %v1755, 0.0
    %v1772 = vmax.f32 %v1757, 0.0
    %v1773 = vmax.f32 %v1760, 0.0
    %v1774 = vmax.f32 %v1762, 0.0
    %v1775 = vmax.f32 %v1765, 0.0
    %v1776 = vmax.f32 %v1767, 0.0
    %v1777 = vpack.c.bf16 %v1769, %v1769
    %v1778 = vpack.c.bf16 %v1770, %v1770
    %v1779 = vpack.c.bf16 %v1771, %v1771
    %v1780 = vpack.c.bf16 %v1772, %v1772
    %v1781 = vpack.c.bf16 %v1773, %v1773
    %v1782 = vpack.c.bf16 %v1774, %v1774
    %v1783 = vpack.c.bf16 %v1775, %v1775
    %v1784 = vpack.c.bf16 %v1776, %v1776
    %v1792 = vunpack.c.l.b16 %v1777
    %v1793 = vunpack.c.l.b16 %v1778
    %v1794 = vunpack.c.l.b16 %v1779
    %v1795 = vunpack.c.l.b16 %v1780
    %v1796 = vunpack.c.l.b16 %v1781
    %v1797 = vunpack.c.l.b16 %v1782
    %v1798 = vunpack.c.l.b16 %v1783
    %v1799 = vpack.c.b16 %v1793, %v1792
    %v1800 = vpack.c.b16 %v1795, %v1794
    %v1801 = vpack.c.b16 %v1797, %v1796
    %v1802 = vpack.c.b16 %v1798, %v1798
    %v1804 = vshrl.u32 %v1799, 16
    %v1806 = vshll.u32 %v1799, 16
    %v1808 = vrot.slane %v1806, 1
    %v1809 = vor.u32 %v1804, %v1808
    %v1811 = vshll.u32 %v1800, 16
    %v1813 = vrot.slane %v1811, 1
    %v1814 = vsel %vm258, %v1809, %v1813
    %v1815 = vshrl.u32 %v1800, 16
    %v1817 = vor.u32 %v1815, %v1813
    %v1819 = vshll.u32 %v1801, 16
    %v1821 = vrot.slane %v1819, 1
    %v1822 = vsel %vm258, %v1817, %v1821
    %v1823 = vshrl.u32 %v1801, 16
    %v1825 = vor.u32 %v1823, %v1821
    %v1827 = vshll.u32 %v1802, 16
    %v1829 = vrot.slane %v1827, 1
    %v1830 = vsel %vm258, %v1825, %v1829
    %v1831 = vshrl.u32 %v1802, 16
    %v1833 = vor.u32 %v1831, %v1829
    %1834 = vrot.lane.b32.xlu0 %v1814, 32
    %v1835 = vpop.permute.xlu0 %1834
    %1836 = vrot.lane.b32.xlu0 %v1822, 32
    %v1837 = vpop.permute.xlu0 %1836
    %1838 = vrot.lane.b32.xlu0 %v1830, 32
    %v1839 = vpop.permute.xlu0 %1838
    %1840 = vrot.lane.b32.xlu0 %v1833, 32
    %v1841 = vpop.permute.xlu0 %1840
    %v1842 = vrot.slane %v1799, 1
    %v1843 = vrot.slane %v1800, 1
    %v1844 = vsel %vm298, %v1842, %v1843
    %v1845 = vrot.slane %v1801, 1
    %v1846 = vsel %vm298, %v1843, %v1845
    %v1847 = vrot.slane %v1802, 1
    %v1848 = vsel %vm298, %v1845, %v1847
    %1849 = vrot.lane.b32.xlu0 %v1844, 64
    %v1850 = vpop.permute.xlu0 %1849
    %1851 = vrot.lane.b32.xlu0 %v1846, 64
    %v1852 = vpop.permute.xlu0 %1851
    %1853 = vrot.lane.b32.xlu0 %v1848, 64
    %v1854 = vpop.permute.xlu0 %1853
    %1855 = vrot.lane.b32.xlu0 %v1847, 64
    %v1856 = vpop.permute.xlu0 %1855
    %v1858 = vunpack.c.l.b16 %v1784
    %v1859 = vpack.c.b16 %v1858, %v1798
    %v1860 = vrot.slane %v1804, 1
    %v1861 = vrot.slane %v1806, 2
    %v1862 = vor.u32 %v1860, %v1861
    %v1863 = vrot.slane %v1815, 1
    %v1864 = vrot.slane %v1811, 2
    %v1865 = vor.u32 %v1863, %v1864
    %v1866 = vsel %vm314, %v1862, %v1865
    %v1867 = vrot.slane %v1823, 1
    %v1868 = vrot.slane %v1819, 2
    %v1869 = vor.u32 %v1867, %v1868
    %v1870 = vsel %vm314, %v1865, %v1869
    %v1872 = vshrl.u32 %v1859, 16
    %v1874 = vrot.slane %v1872, 1
    %v1875 = vshll.u32 %v1859, 16
    %v1877 = vrot.slane %v1875, 2
    %v1878 = vor.u32 %v1874, %v1877
    %v1879 = vsel %vm314, %v1869, %v1878
    %1880 = vrot.lane.b32.xlu0 %v1866, 96
    %v1881 = vpop.permute.xlu0 %1880
    %1882 = vrot.lane.b32.xlu0 %v1870, 96
    %v1883 = vpop.permute.xlu0 %1882
    %1884 = vrot.lane.b32.xlu0 %v1879, 96
    %v1885 = vpop.permute.xlu0 %1884
    %1886 = vrot.lane.b32.xlu0 %v1878, 96
    %v1887 = vpop.permute.xlu0 %1886
    %v1888 = vrot.slane %v1799, 2
    %v1889 = vrot.slane %v1800, 2
    %v1890 = vsel %vm568, %v1888, %v1889
    %v1891 = vrot.slane %v1801, 2
    %v1892 = vsel %vm568, %v1889, %v1891
    %v1893 = vrot.slane %v1859, 2
    %v1894 = vsel %vm568, %v1891, %v1893
    %v1895 = vrot.slane %v1804, 2
    %v1896 = vrot.slane %v1806, 3
    %v1897 = vor.u32 %v1895, %v1896
    %v1898 = vrot.slane %v1815, 2
    %v1899 = vrot.slane %v1811, 3
    %v1900 = vor.u32 %v1898, %v1899
    %v1901 = vsel %vm576, %v1897, %v1900
    %v1902 = vrot.slane %v1823, 2
    %v1903 = vrot.slane %v1819, 3
    %v1904 = vor.u32 %v1902, %v1903
    %v1905 = vsel %vm576, %v1900, %v1904
    %v1906 = vrot.slane %v1872, 2
    %v1907 = vrot.slane %v1875, 3
    %v1908 = vor.u32 %v1906, %v1907
    %v1909 = vsel %vm576, %v1904, %v1908
    %1910 = vrot.lane.b32.xlu0 %v1901, 32
    %v1911 = vpop.permute.xlu0 %1910
    %1912 = vrot.lane.b32.xlu0 %v1905, 32
    %v1913 = vpop.permute.xlu0 %1912
    %1914 = vrot.lane.b32.xlu0 %v1909, 32
    %v1915 = vpop.permute.xlu0 %1914
    %1916 = vrot.lane.b32.xlu0 %v1908, 32
    %v1917 = vpop.permute.xlu0 %1916
    %v1918 = vrot.slane %v1799, 3
    %v1919 = vrot.slane %v1800, 3
    %v1920 = vsel %vm600, %v1918, %v1919
    %v1921 = vrot.slane %v1801, 3
    %v1922 = vsel %vm600, %v1919, %v1921
    %v1923 = vrot.slane %v1859, 3
    %v1924 = vsel %vm600, %v1921, %v1923
    %1925 = vrot.lane.b32.xlu0 %v1920, 64
    %v1926 = vpop.permute.xlu0 %1925
    %1927 = vrot.lane.b32.xlu0 %v1922, 64
    %v1928 = vpop.permute.xlu0 %1927
    %1929 = vrot.lane.b32.xlu0 %v1924, 64
    %v1930 = vpop.permute.xlu0 %1929
    %1931 = vrot.lane.b32.xlu0 %v1923, 64
    %v1932 = vpop.permute.xlu0 %1931
    %v1933 = vrot.slane %v1804, 3
    %v1934 = vrot.slane %v1806, 4
    %v1935 = vor.u32 %v1933, %v1934
    %v1936 = vrot.slane %v1815, 3
    %v1937 = vrot.slane %v1811, 4
    %v1938 = vor.u32 %v1936, %v1937
    %v1939 = vsel %vm616, %v1935, %v1938
    %v1940 = vrot.slane %v1823, 3
    %v1941 = vrot.slane %v1819, 4
    %v1942 = vor.u32 %v1940, %v1941
    %v1943 = vsel %vm616, %v1938, %v1942
    %v1944 = vrot.slane %v1872, 3
    %v1945 = vrot.slane %v1875, 4
    %v1946 = vor.u32 %v1944, %v1945
    %v1947 = vsel %vm616, %v1942, %v1946
    %1948 = vrot.lane.b32.xlu0 %v1939, 96
    %v1949 = vpop.permute.xlu0 %1948
    %1950 = vrot.lane.b32.xlu0 %v1943, 96
    %v1951 = vpop.permute.xlu0 %1950
    %1952 = vrot.lane.b32.xlu0 %v1947, 96
    %v1953 = vpop.permute.xlu0 %1952
    %1954 = vrot.lane.b32.xlu0 %v1946, 96
    %v1955 = vpop.permute.xlu0 %1954
    %v1957 = vsel %vm338, %v1799, %v1835
    %v1959 = vsel %vm338, %v1800, %v1837
    %v1961 = vsel %vm338, %v1801, %v1839
    %v1963 = vsel %vm338, %v1802, %v1841
    %v1965 = vsel %vm347, %v1957, %v1850
    %v1967 = vsel %vm347, %v1959, %v1852
    %v1969 = vsel %vm347, %v1961, %v1854
    %v1971 = vsel %vm347, %v1963, %v1856
    %v1973 = vsel %vm356, %v1965, %v1881
    %v1976 = vsel %vm356, %v1967, %v1883
    %v1979 = vsel %vm356, %v1969, %v1885
    %v1982 = vsel %vm356, %v1971, %v1887
    %v1986 = vsel %vm338, %v1890, %v1911
    %v1989 = vsel %vm338, %v1892, %v1913
    %v1992 = vsel %vm338, %v1894, %v1915
    %v1995 = vsel %vm338, %v1893, %v1917
    %v1997 = vsel %vm347, %v1986, %v1926
    %v1999 = vsel %vm347, %v1989, %v1928
    %v2001 = vsel %vm347, %v1992, %v1930
    %v2003 = vsel %vm347, %v1995, %v1932
    %v2005 = vsel %vm356, %v1997, %v1949
    %v2008 = vsel %vm356, %v1999, %v1951
    %v2011 = vsel %vm356, %v2001, %v1953
    %v2014 = vsel %vm356, %v2003, %v1955
    %2016 = vmatpush.bf16.msra.mxu0 %v774
    %2017 = vmatpush.bf16.msra.mxu0 %v773
    %2018 = vmatpush.bf16.msra.mxu0 %v772
    %2019 = vmatpush.bf16.msra.mxu0 %v771
    %2020 = vmatpush.bf16.msra.mxu0 %v770
    %2021 = vmatpush.bf16.msra.mxu0 %v769
    %2022 = vmatpush.bf16.msra.mxu0 %v768
    %2023 = vmatpush.bf16.msra.mxu0 %v767
    %2024 = vmatmul.bf16.gmra.mxu0 %v1973
    %v2025 = vpop.f32.mrf.mxu0
    %v2026 = vadd.f32 %v701, %v2025
    %v2027 = vpop.f32.mrf.mxu0
    %v2028 = vadd.f32 %v701, %v2027
    %2029 = vmatmul.bf16.gmra.mxu0 %v1976
    %v2030 = vpop.f32.mrf.mxu0
    %v2031 = vadd.f32 %v701, %v2030
    %v2032 = vpop.f32.mrf.mxu0
    %v2033 = vadd.f32 %v701, %v2032
    %2034 = vmatmul.bf16.gmra.mxu0 %v1979
    %v2035 = vpop.f32.mrf.mxu0
    %v2036 = vadd.f32 %v701, %v2035
    %v2037 = vpop.f32.mrf.mxu0
    %v2038 = vadd.f32 %v701, %v2037
    %2039 = vmatmul.bf16.gmra.mxu0 %v1982
    %v2040 = vpop.f32.mrf.mxu0
    %v2041 = vadd.f32 %v701, %v2040
    %v2042 = vpop.f32.mrf.mxu0
    %2043 = vdwg.mxu0
    %2044 = vmatpush.bf16.msra.mxu0 %v782
    %2045 = vmatpush.bf16.msra.mxu0 %v781
    %2046 = vmatpush.bf16.msra.mxu0 %v780
    %2047 = vmatpush.bf16.msra.mxu0 %v779
    %2048 = vmatpush.bf16.msra.mxu0 %v778
    %2049 = vmatpush.bf16.msra.mxu0 %v777
    %2050 = vmatpush.bf16.msra.mxu0 %v776
    %2051 = vmatpush.bf16.msra.mxu0 %v775
    %2052 = vmatmul.bf16.gmra.mxu0 %v2005
    %v2053 = vpop.f32.mrf.mxu0
    %v2054 = vadd.f32 %v2026, %v2053
    %v2055 = vpop.f32.mrf.mxu0
    %v2056 = vadd.f32 %v2028, %v2055
    %2057 = vmatmul.bf16.gmra.mxu0 %v2008
    %v2058 = vpop.f32.mrf.mxu0
    %v2059 = vadd.f32 %v2031, %v2058
    %v2060 = vpop.f32.mrf.mxu0
    %v2061 = vadd.f32 %v2033, %v2060
    %2062 = vmatmul.bf16.gmra.mxu0 %v2011
    %v2063 = vpop.f32.mrf.mxu0
    %v2064 = vadd.f32 %v2036, %v2063
    %v2065 = vpop.f32.mrf.mxu0
    %v2066 = vadd.f32 %v2038, %v2065
    %2067 = vmatmul.bf16.gmra.mxu0 %v2014
    %v2068 = vpop.f32.mrf.mxu0
    %v2069 = vadd.f32 %v2041, %v2068
    %v2070 = vpop.f32.mrf.mxu0
    %2071 = vdwg.mxu0
    %v2072 = vmax.f32 %v2054, 0.0
    %v2073 = vmax.f32 %v2056, 0.0
    %v2074 = vmax.f32 %v2059, 0.0
    %v2075 = vmax.f32 %v2061, 0.0
    %v2076 = vmax.f32 %v2064, 0.0
    %v2077 = vmax.f32 %v2066, 0.0
    %v2078 = vmax.f32 %v2069, 0.0
    %v2079 = vpack.c.bf16 %v2072, %v2072
    %v2080 = vpack.c.bf16 %v2073, %v2073
    %v2081 = vpack.c.bf16 %v2074, %v2074
    %v2082 = vpack.c.bf16 %v2075, %v2075
    %v2083 = vpack.c.bf16 %v2076, %v2076
    %v2084 = vpack.c.bf16 %v2077, %v2077
    %v2085 = vpack.c.bf16 %v2078, %v2078
    %v2092 = vunpack.c.l.b16 %v2079
    %v2093 = vunpack.c.l.b16 %v2080
    %v2094 = vunpack.c.l.b16 %v2081
    %v2095 = vunpack.c.l.b16 %v2082
    %v2096 = vunpack.c.l.b16 %v2083
    %v2097 = vunpack.c.l.b16 %v2084
    %v2098 = vpack.c.b16 %v2093, %v2092
    %v2099 = vpack.c.b16 %v2095, %v2094
    %v2100 = vpack.c.b16 %v2097, %v2096
    %v2102 = vshrl.u32 %v2098, 16
    %v2104 = vshll.u32 %v2098, 16
    %v2106 = vrot.slane %v2104, 1
    %v2107 = vor.u32 %v2102, %v2106
    %v2109 = vshll.u32 %v2099, 16
    %v2111 = vrot.slane %v2109, 1
    %v2112 = vsel %vm258, %v2107, %v2111
    %v2113 = vshrl.u32 %v2099, 16
    %v2115 = vor.u32 %v2113, %v2111
    %v2117 = vshll.u32 %v2100, 16
    %v2119 = vrot.slane %v2117, 1
    %v2120 = vsel %vm258, %v2115, %v2119
    %v2121 = vshrl.u32 %v2100, 16
    %v2123 = vor.u32 %v2121, %v2119
    %2124 = vrot.lane.b32.xlu0 %v2112, 64
    %v2125 = vpop.permute.xlu0 %2124
    %2126 = vrot.lane.b32.xlu0 %v2120, 64
    %v2127 = vpop.permute.xlu0 %2126
    %2128 = vrot.lane.b32.xlu0 %v2123, 64
    %v2129 = vpop.permute.xlu0 %2128
    %v2130 = vrot.slane %v2098, 1
    %v2131 = vrot.slane %v2099, 1
    %v2132 = vsel %vm298, %v2130, %v2131
    %v2133 = vrot.slane %v2100, 1
    %v2134 = vsel %vm298, %v2131, %v2133
    %v2135 = vrot.slane %v2102, 1
    %v2136 = vrot.slane %v2104, 2
    %v2137 = vor.u32 %v2135, %v2136
    %v2138 = vrot.slane %v2113, 1
    %v2139 = vrot.slane %v2109, 2
    %v2140 = vor.u32 %v2138, %v2139
    %v2141 = vsel %vm314, %v2137, %v2140
    %v2142 = vrot.slane %v2121, 1
    %v2143 = vrot.slane %v2117, 2
    %v2144 = vor.u32 %v2142, %v2143
    %v2145 = vsel %vm314, %v2140, %v2144
    %2146 = vrot.lane.b32.xlu0 %v2141, 64
    %v2147 = vpop.permute.xlu0 %2146
    %2148 = vrot.lane.b32.xlu0 %v2145, 64
    %v2149 = vpop.permute.xlu0 %2148
    %2150 = vrot.lane.b32.xlu0 %v2144, 64
    %v2151 = vpop.permute.xlu0 %2150
    %v2152 = vrot.slane %v2098, 2
    %v2153 = vrot.slane %v2099, 2
    %v2154 = vsel %vm568, %v2152, %v2153
    %v2155 = vrot.slane %v2100, 2
    %v2156 = vsel %vm568, %v2153, %v2155
    %v2157 = vrot.slane %v2102, 2
    %v2158 = vrot.slane %v2104, 3
    %v2159 = vor.u32 %v2157, %v2158
    %v2160 = vrot.slane %v2113, 2
    %v2161 = vrot.slane %v2109, 3
    %v2162 = vor.u32 %v2160, %v2161
    %v2163 = vsel %vm576, %v2159, %v2162
    %v2164 = vrot.slane %v2121, 2
    %v2165 = vrot.slane %v2117, 3
    %v2166 = vor.u32 %v2164, %v2165
    %v2167 = vsel %vm576, %v2162, %v2166
    %2168 = vrot.lane.b32.xlu0 %v2163, 64
    %v2169 = vpop.permute.xlu0 %2168
    %2170 = vrot.lane.b32.xlu0 %v2167, 64
    %v2171 = vpop.permute.xlu0 %2170
    %2172 = vrot.lane.b32.xlu0 %v2166, 64
    %v2173 = vpop.permute.xlu0 %2172
    %v2175 = vunpack.c.l.b16 %v2085
    %v2176 = vpack.c.b16 %v2175, %v2175
    %v2177 = vrot.slane %v2098, 3
    %v2178 = vrot.slane %v2099, 3
    %v2179 = vsel %vm600, %v2177, %v2178
    %v2180 = vrot.slane %v2100, 3
    %v2181 = vsel %vm600, %v2178, %v2180
    %v2182 = vrot.slane %v2176, 3
    %v2183 = vsel %vm600, %v2180, %v2182
    %v2184 = vrot.slane %v2102, 3
    %v2185 = vrot.slane %v2104, 4
    %v2186 = vor.u32 %v2184, %v2185
    %v2187 = vrot.slane %v2113, 3
    %v2188 = vrot.slane %v2109, 4
    %v2189 = vor.u32 %v2187, %v2188
    %v2190 = vsel %vm616, %v2186, %v2189
    %v2191 = vrot.slane %v2121, 3
    %v2192 = vrot.slane %v2117, 4
    %v2193 = vor.u32 %v2191, %v2192
    %v2194 = vsel %vm616, %v2189, %v2193
    %v2196 = vshrl.u32 %v2176, 16
    %v2198 = vrot.slane %v2196, 3
    %v2199 = vshll.u32 %v2176, 16
    %v2201 = vrot.slane %v2199, 4
    %v2202 = vor.u32 %v2198, %v2201
    %v2203 = vsel %vm616, %v2193, %v2202
    %2204 = vrot.lane.b32.xlu0 %v2190, 64
    %v2205 = vpop.permute.xlu0 %2204
    %2206 = vrot.lane.b32.xlu0 %v2194, 64
    %v2207 = vpop.permute.xlu0 %2206
    %2208 = vrot.lane.b32.xlu0 %v2203, 64
    %v2209 = vpop.permute.xlu0 %2208
    %v2210 = vpack.c.b16 %v2094, %v2093
    %v2211 = vpack.c.b16 %v2096, %v2095
    %v2212 = vpack.c.b16 %v2175, %v2097
    %v2214 = vshrl.u32 %v2210, 16
    %v2216 = vshll.u32 %v2210, 16
    %v2218 = vrot.slane %v2216, 1
    %v2219 = vor.u32 %v2214, %v2218
    %v2221 = vshll.u32 %v2211, 16
    %v2223 = vrot.slane %v2221, 1
    %v2224 = vsel %vm258, %v2219, %v2223
    %v2225 = vshrl.u32 %v2211, 16
    %v2227 = vor.u32 %v2225, %v2223
    %v2229 = vshll.u32 %v2212, 16
    %v2231 = vrot.slane %v2229, 1
    %v2232 = vsel %vm258, %v2227, %v2231
    %v2233 = vshrl.u32 %v2212, 16
    %v2235 = vor.u32 %v2233, %v2231
    %2236 = vrot.lane.b32.xlu0 %v2224, 64
    %v2237 = vpop.permute.xlu0 %2236
    %2238 = vrot.lane.b32.xlu0 %v2232, 64
    %v2239 = vpop.permute.xlu0 %2238
    %2240 = vrot.lane.b32.xlu0 %v2235, 64
    %v2241 = vpop.permute.xlu0 %2240
    %v2242 = vrot.slane %v2210, 1
    %v2243 = vrot.slane %v2211, 1
    %v2244 = vsel %vm298, %v2242, %v2243
    %v2245 = vrot.slane %v2212, 1
    %v2246 = vsel %vm298, %v2243, %v2245
    %v2247 = vrot.slane %v2214, 1
    %v2248 = vrot.slane %v2216, 2
    %v2249 = vor.u32 %v2247, %v2248
    %v2250 = vrot.slane %v2225, 1
    %v2251 = vrot.slane %v2221, 2
    %v2252 = vor.u32 %v2250, %v2251
    %v2253 = vsel %vm314, %v2249, %v2252
    %v2254 = vrot.slane %v2233, 1
    %v2255 = vrot.slane %v2229, 2
    %v2256 = vor.u32 %v2254, %v2255
    %v2257 = vsel %vm314, %v2252, %v2256
    %2258 = vrot.lane.b32.xlu0 %v2253, 64
    %v2259 = vpop.permute.xlu0 %2258
    %2260 = vrot.lane.b32.xlu0 %v2257, 64
    %v2261 = vpop.permute.xlu0 %2260
    %2262 = vrot.lane.b32.xlu0 %v2256, 64
    %v2263 = vpop.permute.xlu0 %2262
    %v2265 = vsel %vm347, %v2098, %v2125
    %v2268 = vsel %vm347, %v2099, %v2127
    %v2271 = vsel %vm347, %v2100, %v2129
    %v2275 = vsel %vm347, %v2132, %v2147
    %v2279 = vsel %vm347, %v2134, %v2149
    %v2283 = vsel %vm347, %v2133, %v2151
    %v2287 = vsel %vm347, %v2154, %v2169
    %v2291 = vsel %vm347, %v2156, %v2171
    %v2295 = vsel %vm347, %v2155, %v2173
    %v2299 = vsel %vm347, %v2179, %v2205
    %v2303 = vsel %vm347, %v2181, %v2207
    %v2307 = vsel %vm347, %v2183, %v2209
    %v2310 = vsel %vm347, %v2210, %v2237
    %v2313 = vsel %vm347, %v2211, %v2239
    %v2316 = vsel %vm347, %v2212, %v2241
    %v2320 = vsel %vm347, %v2244, %v2259
    %v2324 = vsel %vm347, %v2246, %v2261
    %v2328 = vsel %vm347, %v2245, %v2263
    %2330 = vmatpush.bf16.msra.mxu0 %v1315
    %2331 = vmatpush.bf16.msra.mxu0 %v1314
    %2332 = vmatpush.bf16.msra.mxu0 %v1313
    %2333 = vmatpush.bf16.msra.mxu0 %v1312
    %2334 = vmatpush.bf16.msra.mxu0 %v1311
    %2335 = vmatpush.bf16.msra.mxu0 %v1310
    %2336 = vmatpush.bf16.msra.mxu0 %v1309
    %2337 = vmatpush.bf16.msra.mxu0 %v1308
    %2338 = vmatmul.bf16.gmra.mxu0 %v2265
    %v2339 = vpop.f32.mrf.mxu0
    %v2340 = vadd.f32 %v1114, %v2339
    %v2341 = vpop.f32.mrf.mxu0
    %v2342 = vadd.f32 %v1114, %v2341
    %2343 = vmatmul.bf16.gmra.mxu0 %v2268
    %v2344 = vpop.f32.mrf.mxu0
    %v2345 = vadd.f32 %v1114, %v2344
    %v2346 = vpop.f32.mrf.mxu0
    %v2347 = vadd.f32 %v1114, %v2346
    %2348 = vmatmul.bf16.gmra.mxu0 %v2271
    %v2349 = vpop.f32.mrf.mxu0
    %v2350 = vadd.f32 %v1114, %v2349
    %v2351 = vpop.f32.mrf.mxu0
    %v2352 = vadd.f32 %v1114, %v2351
    %2353 = vdwg.mxu0
    %2354 = vmatpush.bf16.msra.mxu0 %v1323
    %2355 = vmatpush.bf16.msra.mxu0 %v1322
    %2356 = vmatpush.bf16.msra.mxu0 %v1321
    %2357 = vmatpush.bf16.msra.mxu0 %v1320
    %2358 = vmatpush.bf16.msra.mxu0 %v1319
    %2359 = vmatpush.bf16.msra.mxu0 %v1318
    %2360 = vmatpush.bf16.msra.mxu0 %v1317
    %2361 = vmatpush.bf16.msra.mxu0 %v1316
    %2362 = vmatmul.bf16.gmra.mxu0 %v2275
    %v2363 = vpop.f32.mrf.mxu0
    %v2364 = vadd.f32 %v2340, %v2363
    %v2365 = vpop.f32.mrf.mxu0
    %v2366 = vadd.f32 %v2342, %v2365
    %2367 = vmatmul.bf16.gmra.mxu0 %v2279
    %v2368 = vpop.f32.mrf.mxu0
    %v2369 = vadd.f32 %v2345, %v2368
    %v2370 = vpop.f32.mrf.mxu0
    %v2371 = vadd.f32 %v2347, %v2370
    %2372 = vmatmul.bf16.gmra.mxu0 %v2283
    %v2373 = vpop.f32.mrf.mxu0
    %v2374 = vadd.f32 %v2350, %v2373
    %v2375 = vpop.f32.mrf.mxu0
    %v2376 = vadd.f32 %v2352, %v2375
    %2377 = vdwg.mxu0
    %2378 = vmatpush.bf16.msra.mxu0 %v1331
    %2379 = vmatpush.bf16.msra.mxu0 %v1330
    %2380 = vmatpush.bf16.msra.mxu0 %v1329
    %2381 = vmatpush.bf16.msra.mxu0 %v1328
    %2382 = vmatpush.bf16.msra.mxu0 %v1327
    %2383 = vmatpush.bf16.msra.mxu0 %v1326
    %2384 = vmatpush.bf16.msra.mxu0 %v1325
    %2385 = vmatpush.bf16.msra.mxu0 %v1324
    %2386 = vmatmul.bf16.gmra.mxu0 %v2287
    %v2387 = vpop.f32.mrf.mxu0
    %v2388 = vadd.f32 %v2364, %v2387
    %v2389 = vpop.f32.mrf.mxu0
    %v2390 = vadd.f32 %v2366, %v2389
    %2391 = vmatmul.bf16.gmra.mxu0 %v2291
    %v2392 = vpop.f32.mrf.mxu0
    %v2393 = vadd.f32 %v2369, %v2392
    %v2394 = vpop.f32.mrf.mxu0
    %v2395 = vadd.f32 %v2371, %v2394
    %2396 = vmatmul.bf16.gmra.mxu0 %v2295
    %v2397 = vpop.f32.mrf.mxu0
    %v2398 = vadd.f32 %v2374, %v2397
    %v2399 = vpop.f32.mrf.mxu0
    %v2400 = vadd.f32 %v2376, %v2399
    %2401 = vdwg.mxu0
    %2402 = vmatpush.bf16.msra.mxu0 %v1339
    %2403 = vmatpush.bf16.msra.mxu0 %v1338
    %2404 = vmatpush.bf16.msra.mxu0 %v1337
    %2405 = vmatpush.bf16.msra.mxu0 %v1336
    %2406 = vmatpush.bf16.msra.mxu0 %v1335
    %2407 = vmatpush.bf16.msra.mxu0 %v1334
    %2408 = vmatpush.bf16.msra.mxu0 %v1333
    %2409 = vmatpush.bf16.msra.mxu0 %v1332
    %2410 = vmatmul.bf16.gmra.mxu0 %v2299
    %v2411 = vpop.f32.mrf.mxu0
    %v2412 = vadd.f32 %v2388, %v2411
    %v2413 = vpop.f32.mrf.mxu0
    %v2414 = vadd.f32 %v2390, %v2413
    %2415 = vmatmul.bf16.gmra.mxu0 %v2303
    %v2416 = vpop.f32.mrf.mxu0
    %v2417 = vadd.f32 %v2393, %v2416
    %v2418 = vpop.f32.mrf.mxu0
    %v2419 = vadd.f32 %v2395, %v2418
    %2420 = vmatmul.bf16.gmra.mxu0 %v2307
    %v2421 = vpop.f32.mrf.mxu0
    %v2422 = vadd.f32 %v2398, %v2421
    %v2423 = vpop.f32.mrf.mxu0
    %v2424 = vadd.f32 %v2400, %v2423
    %2425 = vdwg.mxu0
    %2426 = vmatpush.bf16.msra.mxu0 %v1347
    %2427 = vmatpush.bf16.msra.mxu0 %v1346
    %2428 = vmatpush.bf16.msra.mxu0 %v1345
    %2429 = vmatpush.bf16.msra.mxu0 %v1344
    %2430 = vmatpush.bf16.msra.mxu0 %v1343
    %2431 = vmatpush.bf16.msra.mxu0 %v1342
    %2432 = vmatpush.bf16.msra.mxu0 %v1341
    %2433 = vmatpush.bf16.msra.mxu0 %v1340
    %2434 = vmatmul.bf16.gmra.mxu0 %v2310
    %v2435 = vpop.f32.mrf.mxu0
    %v2436 = vadd.f32 %v2412, %v2435
    %v2437 = vpop.f32.mrf.mxu0
    %v2438 = vadd.f32 %v2414, %v2437
    %2439 = vmatmul.bf16.gmra.mxu0 %v2313
    %v2440 = vpop.f32.mrf.mxu0
    %v2441 = vadd.f32 %v2417, %v2440
    %v2442 = vpop.f32.mrf.mxu0
    %v2443 = vadd.f32 %v2419, %v2442
    %2444 = vmatmul.bf16.gmra.mxu0 %v2316
    %v2445 = vpop.f32.mrf.mxu0
    %v2446 = vadd.f32 %v2422, %v2445
    %v2447 = vpop.f32.mrf.mxu0
    %v2448 = vadd.f32 %v2424, %v2447
    %2449 = vdwg.mxu0
    %2450 = vmatpush.bf16.msra.mxu0 %v1355
    %2451 = vmatpush.bf16.msra.mxu0 %v1354
    %2452 = vmatpush.bf16.msra.mxu0 %v1353
    %2453 = vmatpush.bf16.msra.mxu0 %v1352
    %2454 = vmatpush.bf16.msra.mxu0 %v1351
    %2455 = vmatpush.bf16.msra.mxu0 %v1350
    %2456 = vmatpush.bf16.msra.mxu0 %v1349
    %2457 = vmatpush.bf16.msra.mxu0 %v1348
    %2458 = vmatmul.bf16.gmra.mxu0 %v2320
    %v2459 = vpop.f32.mrf.mxu0
    %v2460 = vadd.f32 %v2436, %v2459
    %v2461 = vpop.f32.mrf.mxu0
    %v2462 = vadd.f32 %v2438, %v2461
    %2463 = vmatmul.bf16.gmra.mxu0 %v2324
    %v2464 = vpop.f32.mrf.mxu0
    %v2465 = vadd.f32 %v2441, %v2464
    %v2466 = vpop.f32.mrf.mxu0
    %v2467 = vadd.f32 %v2443, %v2466
    %2468 = vmatmul.bf16.gmra.mxu0 %v2328
    %v2469 = vpop.f32.mrf.mxu0
    %v2470 = vadd.f32 %v2446, %v2469
    %v2471 = vpop.f32.mrf.mxu0
    %v2472 = vadd.f32 %v2448, %v2471
    %2473 = vdwg.mxu0
    %v2474 = vmax.f32 %v2460, 0.0
    %v2475 = vmax.f32 %v2462, 0.0
    %v2476 = vmax.f32 %v2465, 0.0
    %v2477 = vmax.f32 %v2467, 0.0
    %v2478 = vmax.f32 %v2470, 0.0
    %v2479 = vmax.f32 %v2472, 0.0
    %v2480 = vmax.f32 %v2474, %v2478
    %v2481 = vsel %vm1555, %v2479, -inf
    %v2482 = vmax.f32 %v2475, %v2481
    %v2483 = vmax.f32 %v2480, %v2482
    %v2484 = vmax.f32 %v2476, %v2477
    %v2485 = vmax.f32 %v2483, %v2484
    %v2486 = vrot.slane %v2485, 4
    %v2487 = vmax.f32 %v2485, %v2486
    %v2488 = vrot.slane %v2487, 2
    %v2489 = vmax.f32 %v2487, %v2488
    %v2490 = vrot.slane %v2489, 1
    %v2491 = vmax.f32 %v2489, %v2490
    %vm2492 = vcmask 1040384
    %v2493 = vsel %vm2492, %v1566, %v2491
    %v2494 = vld [vmem:[%s7] sm:$0xff]
    %v2495 = vld [vmem:[%s7 + $0x8] sm:$0xff]
    %v2496 = vld [vmem:[%s7 + $0x10] sm:$0xff]
    %v2497 = vld [vmem:[%s7 + $0x18] sm:$0xff]
    %v2498 = vld [vmem:[%s7 + $0x20] sm:$0xff]
    %v2499 = vld [vmem:[%s7 + $0x28] sm:$0xff]
    %v2500 = vld [vmem:[%s7 + $0x30] sm:$0xff]
    %v2501 = vld [vmem:[%s7 + $0x38] sm:$0xff]
    %v2502 = vld [vmem:[%s7 + $0x40] sm:$0xff]
    %v2503 = vld [vmem:[%s7 + $0x48] sm:$0xff]
    %v2504 = vld [vmem:[%s7 + $0x50] sm:$0xff]
    %v2505 = vld [vmem:[%s7 + $0x58] sm:$0xff]
    %v2506 = vld [vmem:[%s7 + $0x60] sm:$0xff]
    %v2507 = vld [vmem:[%s7 + $0x68] sm:$0xff]
    %v2508 = vld [vmem:[%s7 + $0x70] sm:$0xff]
    %v2509 = vld [vmem:[%s7 + $0x78] sm:$0xff]
    %v2510 = vld [vmem:[%s7 + $0x80] sm:$0xff]
    %v2511 = vld [vmem:[%s7 + $0x88] sm:$0xff]
    %v2512 = vld [vmem:[%s7 + $0x90] sm:$0xff]
    %v2513 = vld [vmem:[%s7 + $0x98] sm:$0xff]
    %v2514 = vld [vmem:[%s7 + $0xa0] sm:$0xff]
    %v2515 = vld [vmem:[%s7 + $0xa8] sm:$0xff]
    %v2516 = vld [vmem:[%s7 + $0xb0] sm:$0xff]
    %v2517 = vld [vmem:[%s7 + $0xb8] sm:$0xff]
    %v2518 = vld [vmem:[%s7 + $0xc0] sm:$0xff]
    %v2519 = vld [vmem:[%s7 + $0xc8] sm:$0xff]
    %v2520 = vld [vmem:[%s7 + $0xd0] sm:$0xff]
    %v2521 = vld [vmem:[%s7 + $0xd8] sm:$0xff]
    %v2522 = vld [vmem:[%s7 + $0xe0] sm:$0xff]
    %v2523 = vld [vmem:[%s7 + $0xe8] sm:$0xff]
    %v2524 = vld [vmem:[%s7 + $0xf0] sm:$0xff]
    %v2525 = vld [vmem:[%s7 + $0xf8] sm:$0xff]
    %v2526 = vld [vmem:[%s8] sm:$0x3]
    %v2528 = vperm.slane %v2526, 0
    %v2529 = vperm.slane %v2526, 1
    %2532 = vmatpush.msra.mxu0 %v2524
    %2533 = vmatpush.msra.mxu0 %v2522
    %2534 = vmatpush.msra.mxu0 %v2520
    %2535 = vmatpush.msra.mxu0 %v2518
    %2536 = vmatpush.msra.mxu0 %v2516
    %2537 = vmatpush.msra.mxu0 %v2514
    %2538 = vmatpush.msra.mxu0 %v2512
    %2539 = vmatpush.msra.mxu0 %v2510
    %2540 = vmatpush.msra.mxu0 %v2508
    %2541 = vmatpush.msra.mxu0 %v2506
    %2542 = vmatpush.msra.mxu0 %v2504
    %2543 = vmatpush.msra.mxu0 %v2502
    %2544 = vmatpush.msra.mxu0 %v2500
    %2545 = vmatpush.msra.mxu0 %v2498
    %2546 = vmatpush.msra.mxu0 %v2496
    %2547 = vmatpush.msra.mxu0 %v2494
    %2548 = vmatmul.f32.gmra.mxu0 %v2493
    %v2549 = vpop.f32.mrf.mxu0
    %v2550 = vadd.f32 %v2528, %v2549
    %2551 = vdwg.mxu0
    %2552 = vmatpush.msra.mxu0 %v2525
    %2553 = vmatpush.msra.mxu0 %v2523
    %2554 = vmatpush.msra.mxu0 %v2521
    %2555 = vmatpush.msra.mxu0 %v2519
    %2556 = vmatpush.msra.mxu0 %v2517
    %2557 = vmatpush.msra.mxu0 %v2515
    %2558 = vmatpush.msra.mxu0 %v2513
    %2559 = vmatpush.msra.mxu0 %v2511
    %2560 = vmatpush.msra.mxu0 %v2509
    %2561 = vmatpush.msra.mxu0 %v2507
    %2562 = vmatpush.msra.mxu0 %v2505
    %2563 = vmatpush.msra.mxu0 %v2503
    %2564 = vmatpush.msra.mxu0 %v2501
    %2565 = vmatpush.msra.mxu0 %v2499
    %2566 = vmatpush.msra.mxu0 %v2497
    %2567 = vmatpush.msra.mxu0 %v2495
    %2568 = vmatmul.f32.gmra.mxu0 %v2493
    %v2569 = vpop.f32.mrf.mxu0
    %v2570 = vadd.f32 %v2529, %v2569
    %2571 = vdwg.mxu0
    %vm2572 = vcmp.gt.f32.partialorder %v2550, 0.0
    %vm2573 = vcmp.gt.f32.partialorder %v2570, 0.0
    %v2574 = vmul.f32 %v2550, 0.01
    %v2575 = vmul.f32 %v2570, 0.01
    %v2576 = vsel %vm2572, %v2550, %v2574
    %v2577 = vsel %vm2573, %v2570, %v2575
    %v2580 = vrot.slane %v2577, 6
    %vm2581 = vcmask 1041408
    %v2582 = vsel %vm2581, %v2576, %v2580
    %2584 = vst [vmem:[#allocation2] sm:$0xf] %v2582
    // Predicated region
    $region38: #{sequence_protein_forward.1} parent=1 // pred_check
      _
    $region39: #{sequence_protein_forward.1} parent=1 // pred_check_branch
      %2586 = sbr.rel (0) target = $region41
    $region40: #{sequence_protein_forward.1} parent=1 // pred_region
      %2588 = vsyncadd [#allocation3], 0
      %s2590 = sshll.u32 [#allocation2], 4
      %s2591 = int_to_ptr.vmem [resolvable:$true] %s2590
      %s2592 = sshll.u32 %s9, 4
      %s2593 = int_to_ptr.hbm [resolvable:$true] %s2592
      %2595 = dma.vmem_to_hbm [thread:$0]  %s2591, 64, %s2593, [#allocation3]
    $region41: #{sequence_protein_forward.1} parent=1 // pred_fallthru
      _
    // Predicated region
    $region42: #{sequence_protein_forward.1} parent=1 // pred_check
      _
    $region43: #{sequence_protein_forward.1} parent=1 // pred_check_branch
      %2597 = sbr.rel (0) target = $region45
    $region44: #{sequence_protein_forward.1} parent=1 // pred_region
      %2599 = dma.done [#allocation3], 64
    $region45: #{sequence_protein_forward.1} parent=1 // pred_fallthru
      _
    %2600 = vsyncpa [#allocation3], 1

</llo_original>
